<compile_context>
chip_gen: v7x
topology: tpu7x:2x2x1
jax: 0.10.0
libtpu: 0.0.40
codegen_flags: <defaults>
</compile_context>

<pallas_src>
import functools

import jax
import jax.numpy as jnp
from jax.experimental import pallas as pl
from jax.experimental.pallas import tpu as pltpu

_EPS = 1e-12  # guards the W**2 column-sum normalization against ~0 columns


# ---------------------------------------------------------------------------
# Fused Pallas kernel: dcnn(x) -> dcnn(y1) -> res_wFM(y2, x)
# ---------------------------------------------------------------------------
def _fused_dcnn_kernel(
    x_ref,        # (bt, s, n, in_ch)          input batch tile
    w1_ref,       # (k, in_ch, mid_ch)         normalized conv-1 taps
    w2_ref,       # (k, mid_ch, out_ch)        normalized conv-2 taps
    wfm_x_ref,    # (in_ch, out_ch)            res_wFM weight, x half
    wfm_y_ref,    # (out_ch, out_ch)           res_wFM weight, y2 half
    o_ref,        # (bt, s, n, out_ch)         output batch tile
    xp1_ref,      # VMEM (bt, s+pad, n, in_ch) causally padded layer-1 input
    xp2_ref,      # VMEM (bt, s+pad, n, mid_ch) causally padded layer-2 input
    *, k, d, s, n, bt,
):
    pad = (k - 1) * d
    in_ch = x_ref.shape[-1]
    mid_ch = w1_ref.shape[-1]
    out_ch = w2_ref.shape[-1]
    rows = bt * s * n  # matmul M dimension (batch folded in)

    x = x_ref[...]  # (bt, s, n, in_ch)

    # ---- layer 1: causal dilated conv along s, in_ch -> mid_ch --------------
    if pad:
        xp1_ref[:, pl.ds(0, pad), :, :] = jnp.zeros((bt, pad, n, in_ch), xp1_ref.dtype)
    xp1_ref[:, pl.ds(pad, s), :, :] = x
    # k taps accumulate directly in the f32 accumulator (== single K=k*in_ch matmul)
    y1 = jnp.dot(
        xp1_ref[:, pl.ds(0, s), :, :].reshape(rows, in_ch), w1_ref[0],
        preferred_element_type=jnp.float32)
    for j in range(1, k):
        y1 = y1 + jnp.dot(
            xp1_ref[:, pl.ds(j * d, s), :, :].reshape(rows, in_ch), w1_ref[j],
            preferred_element_type=jnp.float32)

    # ---- layer 2: causal dilated conv along s, mid_ch -> out_ch -------------
    if pad:
        xp2_ref[:, pl.ds(0, pad), :, :] = jnp.zeros((bt, pad, n, mid_ch), xp2_ref.dtype)
    xp2_ref[:, pl.ds(pad, s), :, :] = y1.reshape(bt, s, n, mid_ch).astype(xp2_ref.dtype)
    y2 = jnp.dot(
        xp2_ref[:, pl.ds(0, s), :, :].reshape(rows, mid_ch), w2_ref[0],
        preferred_element_type=jnp.float32)
    for j in range(1, k):
        y2 = y2 + jnp.dot(
            xp2_ref[:, pl.ds(j * d, s), :, :].reshape(rows, mid_ch), w2_ref[j],
            preferred_element_type=jnp.float32)

    # ---- res_wFM: cat([x, y2]) @ Wn  ==  x @ Wn[:in_ch] + y2 @ Wn[in_ch:] ----
    out = jnp.dot(x.reshape(rows, in_ch), wfm_x_ref[...],
                  preferred_element_type=jnp.float32)
    out = out + jnp.dot(y2.astype(wfm_y_ref.dtype), wfm_y_ref[...],
                        preferred_element_type=jnp.float32)

    o_ref[...] = out.reshape(bt, s, n, out_ch).astype(o_ref.dtype)


# ---------------------------------------------------------------------------
# Parameter glue (tiny; runs as plain XLA outside the kernel)
# ---------------------------------------------------------------------------
def _normalized_conv_weight(W):
    """W**2 normalized over the (k*in_ch) column sum, like DCNN.dcnn."""
    k, in_ch, out_ch = W.shape
    W2 = (W.astype(jnp.float32) ** 2).reshape(k * in_ch, out_ch)
    Wn = W2 / (W2.sum(axis=0, keepdims=True) + _EPS)
    return Wn.reshape(k, in_ch, out_ch)


def _normalized_fm_weight(W):
    """W**2 normalized over the column sum, like DCNN.res_wFM."""
    W2 = W.astype(jnp.float32) ** 2
    return W2 / (W2.sum(axis=0, keepdims=True) + _EPS)


def _pick_batch_tile(b, rows_per_batch, target_rows=128):
    """Smallest divisor of b whose tile reaches >= target matmul rows."""
    for bt in range(1, b + 1):
        if b % bt == 0 and bt * rows_per_batch >= target_rows:
            return bt
    return b


# ---------------------------------------------------------------------------
# Public forward (equivalent of DCNN.forward)
# ---------------------------------------------------------------------------
def dcnn_forward(x, params, k, skip, *, compute_dtype=jnp.float32):
    """Fused forward of DCNN: y1 = dcnn(x), y2 = dcnn(y1), out = res_wFM(y2, x).

    compute_dtype: pass jnp.bfloat16 on v6e/v7x for bf16 MXU feeding (f32
    accumulation is always kept); default f32 for exact parity with PyTorch.
    """
    b, s, n, in_ch = x.shape
    if s != n:
        # The torch reshape(b, s, n, -1) after the conv only has its intended
        # (identity) meaning when s == n; reject the degenerate case.
        raise ValueError(f"DCNN forward assumes s == n, got s={s}, n={n}")

    w1, w2, wfm = params["w_1"], params["w_2"], params["wFM"]
    assert w1.shape[0] == k and w2.shape[0] == k and w1.shape[1] == in_ch
    mid_ch, out_ch = w1.shape[2], w2.shape[2]
    assert w2.shape[1] == mid_ch and wfm.shape == (in_ch + out_ch, out_ch)

    d = skip
    pad = (k - 1) * d

    # Normalize once in the wrapper (tiny params), cast activations/weights to
    # the compute dtype; the kernel accumulates in f32 regardless.
    w1n = _normalized_conv_weight(w1).astype(compute_dtype)
    w2n = _normalized_conv_weight(w2).astype(compute_dtype)
    wfmn = _normalized_fm_weight(wfm)
    wfm_x = wfmn[:in_ch].astype(compute_dtype)
    wfm_y = wfmn[in_ch:].astype(compute_dtype)
    xc = x.astype(compute_dtype)

    # Fold enough batch elements into one grid step to fill >=128 matmul rows;
    # the (small) per-step blocks keep VMEM usage modest on 64-MiB v7x.  For
    # production-scale s, the next step would be an s-tile grid axis with a
    # (k-1)*d halo instead of growing this block.
    bt = _pick_batch_tile(b, s * n)
    nb = b // bt

    kernel = functools.partial(_fused_dcnn_kernel, k=k, d=d, s=s, n=n, bt=bt)
    out = pl.pallas_call(
        kernel,
        out_shape=jax.ShapeDtypeStruct((b, s, n, out_ch), x.dtype),
        grid=(nb,),
        in_specs=[
            pl.BlockSpec((bt, s, n, in_ch), lambda i: (i, 0, 0, 0)),
            pl.BlockSpec((k, in_ch, mid_ch), lambda i: (0, 0, 0)),
            pl.BlockSpec((k, mid_ch, out_ch), lambda i: (0, 0, 0)),
            pl.BlockSpec((in_ch, out_ch), lambda i: (0, 0)),
            pl.BlockSpec((out_ch, out_ch), lambda i: (0, 0)),
        ],
        out_specs=pl.BlockSpec((bt, s, n, out_ch), lambda i: (i, 0, 0, 0)),
        scratch_shapes=[
            pltpu.VMEM((bt, s + pad, n, in_ch), compute_dtype),
            pltpu.VMEM((bt, s + pad, n, mid_ch), compute_dtype),
        ],
        compiler_params=pltpu.CompilerParams(
            dimension_semantics=("parallel",)),
    )(xc, w1n, w2n, wfm_x, wfm_y)
    return out


# ---------------------------------------------------------------------------
# Pure-JAX reference (mirrors the torch code, incl. the permute/reshape dance)
# ---------------------------------------------------------------------------
def _ref_dcnn(x, d, W, k):
    b, s, n, in_ch = x.shape
    out_ch = W.shape[2]
    W2 = (W ** 2).reshape(-1, out_ch)
    Wn = (W2 / (W2.sum(0) + _EPS)).reshape(k, in_ch, out_ch)
    pad = (k - 1) * d
    xp = jnp.pad(x, ((0, 0), (pad, 0), (0, 0), (0, 0)))
    y = jnp.zeros((b, s, n, out_ch), jnp.float32)
    for j in range(k):
        y = y + jnp.einsum("bsni,io->bsno", xp[:, j * d: j * d + s], Wn[j])
    # torch permute/reshape/permute (identity when s == n, kept for fidelity)
    z = jnp.transpose(y, (0, 2, 1, 3)).reshape(b, s, n, out_ch)
    return jnp.transpose(z, (0, 2, 1, 3)).astype(x.dtype)


def _ref_forward(x, params, k, skip):
    y1 = _ref_dcnn(x, skip, params["w_1"], k)
    y2 = _ref_dcnn(y1, skip, params["w_2"], k)
    W2 = params["wFM"] ** 2
    Wn = W2 / (W2.sum(0) + _EPS)
    cat = jnp.concatenate([x, y2], axis=3)
    flat = cat.reshape(-1, cat.shape[3])
    return (flat @ Wn).reshape(y2.shape)


# ---------------------------------------------------------------------------
if __name__ == "__main__":
    # Small shapes consistent with the module (s == n, as the torch reshape assumes).
    k, skip = 3, 2
    in_ch, mid_ch, out_ch = 16, 32, 16
    b, s, n = 2, 8, 8

    key = jax.random.PRNGKey(0)
    kx, k1, k2, k3 = jax.random.split(key, 4)
    x = jax.random.normal(kx, (b, s, n, in_ch), dtype=jnp.float32)
    params = {
        "w_1": jax.random.uniform(k1, (k, in_ch, mid_ch), dtype=jnp.float32),
        "w_2": jax.random.uniform(k2, (k, mid_ch, out_ch), dtype=jnp.float32),
        "wFM": jax.random.uniform(k3, (in_ch + out_ch, out_ch), dtype=jnp.float32),
    }

    fwd = jax.jit(functools.partial(dcnn_forward, k=k, skip=skip))
    out = jax.block_until_ready(fwd(x, params))

    ref = _ref_forward(x, params, k, skip)
    assert out.shape == (b, s, n, out_ch), out.shape
    assert jnp.allclose(out, ref, atol=1e-4, rtol=1e-4), "mismatch vs reference"

    print("KERNEL_OK")
</pallas_src>

<mosaic_0001>
module attributes {stable_mosaic.version = 11 : i64} {
  func.func @_fused_dcnn_kernel(%arg0: i32, %arg1: memref<2x8x8x16xf32, #tpu.memory_space<vmem>>, %arg2: memref<3x16x32xf32, #tpu.memory_space<vmem>>, %arg3: memref<3x32x16xf32, #tpu.memory_space<vmem>>, %arg4: memref<16x16xf32, #tpu.memory_space<vmem>>, %arg5: memref<16x16xf32, #tpu.memory_space<vmem>>, %arg6: memref<2x8x8x16xf32, #tpu.memory_space<vmem>>, %arg7: memref<2x12x8x16xf32, #tpu.memory_space<vmem>>, %arg8: memref<2x12x8x32xf32, #tpu.memory_space<vmem>>) attributes {dimension_semantics = [#tpu.dimension_semantics<parallel>], iteration_bounds = array<i64: 1>, scalar_prefetch = 0 : i64, scratch_operands = 2 : i64, tpu.core_type = #tpu.core_type<tc>, window_params = [{transform_indices = @transform_0, window_bounds = array<i64: 2, 8, 8, 16>}, {pipeline_mode = #tpu.pipeline_mode<synchronous>, transform_indices = @transform_1, window_bounds = array<i64: 3, 16, 32>}, {pipeline_mode = #tpu.pipeline_mode<synchronous>, transform_indices = @transform_2, window_bounds = array<i64: 3, 32, 16>}, {pipeline_mode = #tpu.pipeline_mode<synchronous>, transform_indices = @transform_3, window_bounds = array<i64: 16, 16>}, {pipeline_mode = #tpu.pipeline_mode<synchronous>, transform_indices = @transform_4, window_bounds = array<i64: 16, 16>}, {transform_indices = @transform_5, window_bounds = array<i64: 2, 8, 8, 16>}]} {
    %c0 = arith.constant 0 : index
    %c0_0 = arith.constant 0 : index
    %c0_1 = arith.constant 0 : index
    %c0_2 = arith.constant 0 : index
    %0 = vector.load %arg1[%c0, %c0_0, %c0_1, %c0_2] : memref<2x8x8x16xf32, #tpu.memory_space<vmem>>, vector<2x8x8x16xf32>
    %cst = arith.constant 0.000000e+00 : f32
    %1 = vector.broadcast %cst : f32 to vector<2x4x8x16xf32>
    %c0_3 = arith.constant 0 : index
    %c0_4 = arith.constant 0 : index
    %c0_5 = arith.constant 0 : index
    %c0_6 = arith.constant 0 : index
    %2 = vector.load %arg7[%c0_3, %c0_4, %c0_5, %c0_6] : memref<2x12x8x16xf32, #tpu.memory_space<vmem>>, vector<2x4x8x16xf32>
    tpu.vector_store %arg7[%c0_3, %c0_4, %c0_5, %c0_6], %1 {strides = array<i32>} : memref<2x12x8x16xf32, #tpu.memory_space<vmem>>, vector<2x4x8x16xf32>,
    %c0_7 = arith.constant 0 : index
    %c4 = arith.constant 4 : index
    %c0_8 = arith.constant 0 : index
    %c0_9 = arith.constant 0 : index
    %3 = vector.load %arg7[%c0_7, %c4, %c0_8, %c0_9] : memref<2x12x8x16xf32, #tpu.memory_space<vmem>>, vector<2x8x8x16xf32>
    tpu.vector_store %arg7[%c0_7, %c4, %c0_8, %c0_9], %0 {strides = array<i32>} : memref<2x12x8x16xf32, #tpu.memory_space<vmem>>, vector<2x8x8x16xf32>,
    %c0_10 = arith.constant 0 : index
    %c0_11 = arith.constant 0 : index
    %c0_12 = arith.constant 0 : index
    %c0_13 = arith.constant 0 : index
    %4 = vector.load %arg7[%c0_10, %c0_11, %c0_12, %c0_13] : memref<2x12x8x16xf32, #tpu.memory_space<vmem>>, vector<2x8x8x16xf32>
    %5 = vector.shape_cast %4 : vector<2x8x8x16xf32> to vector<128x16xf32>
    %c0_14 = arith.constant 0 : index
    %c0_15 = arith.constant 0 : index
    %c0_16 = arith.constant 0 : index
    %6 = vector.load %arg2[%c0_14, %c0_15, %c0_16] : memref<3x16x32xf32, #tpu.memory_space<vmem>>, vector<1x16x32xf32>
    %7 = vector.shape_cast %6 : vector<1x16x32xf32> to vector<16x32xf32>
    %cst_17 = arith.constant dense<0.000000e+00> : vector<128x32xf32>
    %8 = tpu.matmul %5, %7, %cst_17 {dimension_numbers = #tpu.dot_dimension_numbers<[1], [0], [0], [1], [0, 0, 1, 1], [], []>} : vector<128x16xf32>, vector<16x32xf32>, vector<128x32xf32> -> vector<128x32xf32>
    %c0_18 = arith.constant 0 : index
    %c2 = arith.constant 2 : index
    %c0_19 = arith.constant 0 : index
    %c0_20 = arith.constant 0 : index
    %9 = vector.load %arg7[%c0_18, %c2, %c0_19, %c0_20] : memref<2x12x8x16xf32, #tpu.memory_space<vmem>>, vector<2x8x8x16xf32>
    %10 = vector.shape_cast %9 : vector<2x8x8x16xf32> to vector<128x16xf32>
    %c1 = arith.constant 1 : index
    %c0_21 = arith.constant 0 : index
    %c0_22 = arith.constant 0 : index
    %11 = vector.load %arg2[%c1, %c0_21, %c0_22] : memref<3x16x32xf32, #tpu.memory_space<vmem>>, vector<1x16x32xf32>
    %12 = vector.shape_cast %11 : vector<1x16x32xf32> to vector<16x32xf32>
    %cst_23 = arith.constant dense<0.000000e+00> : vector<128x32xf32>
    %13 = tpu.matmul %10, %12, %cst_23 {dimension_numbers = #tpu.dot_dimension_numbers<[1], [0], [0], [1], [0, 0, 1, 1], [], []>} : vector<128x16xf32>, vector<16x32xf32>, vector<128x32xf32> -> vector<128x32xf32>
    %14 = arith.addf %8, %13 : vector<128x32xf32>
    %c0_24 = arith.constant 0 : index
    %c4_25 = arith.constant 4 : index
    %c0_26 = arith.constant 0 : index
    %c0_27 = arith.constant 0 : index
    %15 = vector.load %arg7[%c0_24, %c4_25, %c0_26, %c0_27] : memref<2x12x8x16xf32, #tpu.memory_space<vmem>>, vector<2x8x8x16xf32>
    %16 = vector.shape_cast %15 : vector<2x8x8x16xf32> to vector<128x16xf32>
    %c2_28 = arith.constant 2 : index
    %c0_29 = arith.constant 0 : index
    %c0_30 = arith.constant 0 : index
    %17 = vector.load %arg2[%c2_28, %c0_29, %c0_30] : memref<3x16x32xf32, #tpu.memory_space<vmem>>, vector<1x16x32xf32>
    %18 = vector.shape_cast %17 : vector<1x16x32xf32> to vector<16x32xf32>
    %cst_31 = arith.constant dense<0.000000e+00> : vector<128x32xf32>
    %19 = tpu.matmul %16, %18, %cst_31 {dimension_numbers = #tpu.dot_dimension_numbers<[1], [0], [0], [1], [0, 0, 1, 1], [], []>} : vector<128x16xf32>, vector<16x32xf32>, vector<128x32xf32> -> vector<128x32xf32>
    %20 = arith.addf %14, %19 : vector<128x32xf32>
    %cst_32 = arith.constant 0.000000e+00 : f32
    %21 = vector.broadcast %cst_32 : f32 to vector<2x4x8x32xf32>
    %c0_33 = arith.constant 0 : index
    %c0_34 = arith.constant 0 : index
    %c0_35 = arith.constant 0 : index
    %c0_36 = arith.constant 0 : index
    %22 = vector.load %arg8[%c0_33, %c0_34, %c0_35, %c0_36] : memref<2x12x8x32xf32, #tpu.memory_space<vmem>>, vector<2x4x8x32xf32>
    tpu.vector_store %arg8[%c0_33, %c0_34, %c0_35, %c0_36], %21 {strides = array<i32>} : memref<2x12x8x32xf32, #tpu.memory_space<vmem>>, vector<2x4x8x32xf32>,
    %23 = vector.shape_cast %20 : vector<128x32xf32> to vector<2x8x8x32xf32>
    %c0_37 = arith.constant 0 : index
    %c4_38 = arith.constant 4 : index
    %c0_39 = arith.constant 0 : index
    %c0_40 = arith.constant 0 : index
    %24 = vector.load %arg8[%c0_37, %c4_38, %c0_39, %c0_40] : memref<2x12x8x32xf32, #tpu.memory_space<vmem>>, vector<2x8x8x32xf32>
    tpu.vector_store %arg8[%c0_37, %c4_38, %c0_39, %c0_40], %23 {strides = array<i32>} : memref<2x12x8x32xf32, #tpu.memory_space<vmem>>, vector<2x8x8x32xf32>,
    %c0_41 = arith.constant 0 : index
    %c0_42 = arith.constant 0 : index
    %c0_43 = arith.constant 0 : index
    %c0_44 = arith.constant 0 : index
    %25 = vector.load %arg8[%c0_41, %c0_42, %c0_43, %c0_44] : memref<2x12x8x32xf32, #tpu.memory_space<vmem>>, vector<2x8x8x32xf32>
    %26 = vector.shape_cast %25 : vector<2x8x8x32xf32> to vector<128x32xf32>
    %c0_45 = arith.constant 0 : index
    %c0_46 = arith.constant 0 : index
    %c0_47 = arith.constant 0 : index
    %27 = vector.load %arg3[%c0_45, %c0_46, %c0_47] : memref<3x32x16xf32, #tpu.memory_space<vmem>>, vector<1x32x16xf32>
    %28 = vector.shape_cast %27 : vector<1x32x16xf32> to vector<32x16xf32>
    %cst_48 = arith.constant dense<0.000000e+00> : vector<128x16xf32>
    %29 = tpu.matmul %26, %28, %cst_48 {dimension_numbers = #tpu.dot_dimension_numbers<[1], [0], [0], [1], [0, 0, 1, 1], [], []>} : vector<128x32xf32>, vector<32x16xf32>, vector<128x16xf32> -> vector<128x16xf32>
    %c0_49 = arith.constant 0 : index
    %c2_50 = arith.constant 2 : index
    %c0_51 = arith.constant 0 : index
    %c0_52 = arith.constant 0 : index
    %30 = vector.load %arg8[%c0_49, %c2_50, %c0_51, %c0_52] : memref<2x12x8x32xf32, #tpu.memory_space<vmem>>, vector<2x8x8x32xf32>
    %31 = vector.shape_cast %30 : vector<2x8x8x32xf32> to vector<128x32xf32>
    %c1_53 = arith.constant 1 : index
    %c0_54 = arith.constant 0 : index
    %c0_55 = arith.constant 0 : index
    %32 = vector.load %arg3[%c1_53, %c0_54, %c0_55] : memref<3x32x16xf32, #tpu.memory_space<vmem>>, vector<1x32x16xf32>
    %33 = vector.shape_cast %32 : vector<1x32x16xf32> to vector<32x16xf32>
    %cst_56 = arith.constant dense<0.000000e+00> : vector<128x16xf32>
    %34 = tpu.matmul %31, %33, %cst_56 {dimension_numbers = #tpu.dot_dimension_numbers<[1], [0], [0], [1], [0, 0, 1, 1], [], []>} : vector<128x32xf32>, vector<32x16xf32>, vector<128x16xf32> -> vector<128x16xf32>
    %35 = arith.addf %29, %34 : vector<128x16xf32>
    %c0_57 = arith.constant 0 : index
    %c4_58 = arith.constant 4 : index
    %c0_59 = arith.constant 0 : index
    %c0_60 = arith.constant 0 : index
    %36 = vector.load %arg8[%c0_57, %c4_58, %c0_59, %c0_60] : memref<2x12x8x32xf32, #tpu.memory_space<vmem>>, vector<2x8x8x32xf32>
    %37 = vector.shape_cast %36 : vector<2x8x8x32xf32> to vector<128x32xf32>
    %c2_61 = arith.constant 2 : index
    %c0_62 = arith.constant 0 : index
    %c0_63 = arith.constant 0 : index
    %38 = vector.load %arg3[%c2_61, %c0_62, %c0_63] : memref<3x32x16xf32, #tpu.memory_space<vmem>>, vector<1x32x16xf32>
    %39 = vector.shape_cast %38 : vector<1x32x16xf32> to vector<32x16xf32>
    %cst_64 = arith.constant dense<0.000000e+00> : vector<128x16xf32>
    %40 = tpu.matmul %37, %39, %cst_64 {dimension_numbers = #tpu.dot_dimension_numbers<[1], [0], [0], [1], [0, 0, 1, 1], [], []>} : vector<128x32xf32>, vector<32x16xf32>, vector<128x16xf32> -> vector<128x16xf32>
    %41 = arith.addf %35, %40 : vector<128x16xf32>
    %42 = vector.shape_cast %0 : vector<2x8x8x16xf32> to vector<128x16xf32>
    %c0_65 = arith.constant 0 : index
    %c0_66 = arith.constant 0 : index
    %43 = vector.load %arg4[%c0_65, %c0_66] : memref<16x16xf32, #tpu.memory_space<vmem>>, vector<16x16xf32>
    %cst_67 = arith.constant dense<0.000000e+00> : vector<128x16xf32>
    %44 = tpu.matmul %42, %43, %cst_67 {dimension_numbers = #tpu.dot_dimension_numbers<[1], [0], [0], [1], [0, 0, 1, 1], [], []>} : vector<128x16xf32>, vector<16x16xf32>, vector<128x16xf32> -> vector<128x16xf32>
    %c0_68 = arith.constant 0 : index
    %c0_69 = arith.constant 0 : index
    %45 = vector.load %arg5[%c0_68, %c0_69] : memref<16x16xf32, #tpu.memory_space<vmem>>, vector<16x16xf32>
    %cst_70 = arith.constant dense<0.000000e+00> : vector<128x16xf32>
    %46 = tpu.matmul %41, %45, %cst_70 {dimension_numbers = #tpu.dot_dimension_numbers<[1], [0], [0], [1], [0, 0, 1, 1], [], []>} : vector<128x16xf32>, vector<16x16xf32>, vector<128x16xf32> -> vector<128x16xf32>
    %47 = arith.addf %44, %46 : vector<128x16xf32>
    %48 = vector.shape_cast %47 : vector<128x16xf32> to vector<2x8x8x16xf32>
    %c0_71 = arith.constant 0 : index
    %c0_72 = arith.constant 0 : index
    %c0_73 = arith.constant 0 : index
    %c0_74 = arith.constant 0 : index
    %49 = vector.load %arg6[%c0_71, %c0_72, %c0_73, %c0_74] : memref<2x8x8x16xf32, #tpu.memory_space<vmem>>, vector<2x8x8x16xf32>
    tpu.vector_store %arg6[%c0_71, %c0_72, %c0_73, %c0_74], %48 {strides = array<i32>} : memref<2x8x8x16xf32, #tpu.memory_space<vmem>>, vector<2x8x8x16xf32>,
    return
  }
  func.func @transform_0(%arg0: i32) -> (i32, i32, i32, i32) {
    %c0_i32 = arith.constant 0 : i32
    %c0_i32_0 = arith.constant 0 : i32
    %c0_i32_1 = arith.constant 0 : i32
    %c0_i32_2 = arith.constant 0 : i32
    return %arg0, %c0_i32, %c0_i32_0, %c0_i32_1 : i32, i32, i32, i32
  }
  func.func @transform_1(%arg0: i32) -> (i32, i32, i32) {
    %c0_i32 = arith.constant 0 : i32
    %c0_i32_0 = arith.constant 0 : i32
    %c0_i32_1 = arith.constant 0 : i32
    %c0_i32_2 = arith.constant 0 : i32
    return %c0_i32, %c0_i32_0, %c0_i32_1 : i32, i32, i32
  }
  func.func @transform_2(%arg0: i32) -> (i32, i32, i32) {
    %c0_i32 = arith.constant 0 : i32
    %c0_i32_0 = arith.constant 0 : i32
    %c0_i32_1 = arith.constant 0 : i32
    %c0_i32_2 = arith.constant 0 : i32
    return %c0_i32, %c0_i32_0, %c0_i32_1 : i32, i32, i32
  }
  func.func @transform_3(%arg0: i32) -> (i32, i32) {
    %c0_i32 = arith.constant 0 : i32
    %c0_i32_0 = arith.constant 0 : i32
    %c0_i32_1 = arith.constant 0 : i32
    return %c0_i32, %c0_i32_0 : i32, i32
  }
  func.func @transform_4(%arg0: i32) -> (i32, i32) {
    %c0_i32 = arith.constant 0 : i32
    %c0_i32_0 = arith.constant 0 : i32
    %c0_i32_1 = arith.constant 0 : i32
    return %c0_i32, %c0_i32_0 : i32, i32
  }
  func.func @transform_5(%arg0: i32) -> (i32, i32, i32, i32) {
    %c0_i32 = arith.constant 0 : i32
    %c0_i32_0 = arith.constant 0 : i32
    %c0_i32_1 = arith.constant 0 : i32
    %c0_i32_2 = arith.constant 0 : i32
    return %arg0, %c0_i32, %c0_i32_0, %c0_i32_1 : i32, i32, i32, i32
  }
}

</mosaic_0001>

<llo_original>
// kernel: dcnn_forward.1
$region0: #{dcnn_forward.1}
  #allocation0 [shape = 'u32[]', space=smem, size = 0x4, offset = 0x4, fixed_abs, tag = 'smem constant byte address 0x4 - core index']
  #allocation1 [shape = 'u32[144,128]{1,0:T(1,128)}', space=vmem, size = 0x12000, scoped, tag = 'internal scratch']
  #allocation2 [shape = 'f32[2,12,8,16]{3,2,1,0:T(8,128)}', space=vmem, size = 0x18000, scoped, tag = 'scratch operand']
  #allocation3 [shape = 'f32[2,12,8,32]{3,2,1,0:T(8,128)}', space=vmem, size = 0x18000, scoped, tag = 'scratch operand']
  %s0 = inlined_call_operand.vmem [shape: f32[2,8,8,16], index: 0, kind: input, shape index: {}]
  %s1 = inlined_call_operand.vmem [shape: f32[3,16,32], index: 1, kind: input, shape index: {}]
  %s2 = inlined_call_operand.vmem [shape: f32[3,32,16], index: 2, kind: input, shape index: {}]
  %s3 = inlined_call_operand.vmem [shape: f32[16,16], index: 3, kind: input, shape index: {}]
  %s4 = inlined_call_operand.vmem [shape: f32[16,16], index: 4, kind: input, shape index: {}]
  %s5 = inlined_call_operand.hbm [shape: f32[2,8,8,16], index: 5, kind: output, shape index: {}]
  %s6 = sld [smem:[#allocation0]]
  $region30: #{dcnn_forward.1} parent=0
    _
  %s8 = ssub.s32 1, %s6
  %s9 = scalar_select 0, %s8, %s6
  $region1: #{dcnn_forward.1} parent=0
    #allocation4 [shape = 'u8[65536]{0}', space=vmem, size = 0x10000, scoped, tag = 'output window, operand 0, single buffered']
    #allocation5 [shape = 's32[1]{0}', space=sflag, size = 0x4, scoped, tag = 'scoped memory for dcnn_forward.1']
    %10 = vsyncpa [#allocation5], 0
    // Predicated region
    $region2: #{dcnn_forward.1} parent=1 // pred_check
      _
    $region3: #{dcnn_forward.1} parent=1 // pred_check_branch
      %12 = sbr.rel (0) target = $region5
    $region4: #{dcnn_forward.1} parent=1 // pred_region
      _
    $region5: #{dcnn_forward.1} parent=1 // pred_fallthru
      _
    // Predicated region
    $region6: #{dcnn_forward.1} parent=1 // pred_check
      _
    $region7: #{dcnn_forward.1} parent=1 // pred_check_branch
      %14 = sbr.rel (0) target = $region9
    $region8: #{dcnn_forward.1} parent=1 // pred_region
      _
    $region9: #{dcnn_forward.1} parent=1 // pred_fallthru
      _
    // Predicated region
    $region10: #{dcnn_forward.1} parent=1 // pred_check
      _
    $region11: #{dcnn_forward.1} parent=1 // pred_check_branch
      %16 = sbr.rel (0) target = $region13
    $region12: #{dcnn_forward.1} parent=1 // pred_region
      _
    $region13: #{dcnn_forward.1} parent=1 // pred_fallthru
      _
    // Predicated region
    $region14: #{dcnn_forward.1} parent=1 // pred_check
      _
    $region15: #{dcnn_forward.1} parent=1 // pred_check_branch
      %18 = sbr.rel (0) target = $region17
    $region16: #{dcnn_forward.1} parent=1 // pred_region
      _
    $region17: #{dcnn_forward.1} parent=1 // pred_fallthru
      _
    // Predicated region
    $region18: #{dcnn_forward.1} parent=1 // pred_check
      _
    $region19: #{dcnn_forward.1} parent=1 // pred_check_branch
      %20 = sbr.rel (0) target = $region21
    $region20: #{dcnn_forward.1} parent=1 // pred_region
      _
    $region21: #{dcnn_forward.1} parent=1 // pred_fallthru
      _
    %v21 = vld [vmem:[%s0] sm:$0xff]
    %v22 = vld [vmem:[%s0 + $0x8] sm:$0xff]
    %v23 = vld [vmem:[%s0 + $0x10] sm:$0xff]
    %v24 = vld [vmem:[%s0 + $0x18] sm:$0xff]
    %v25 = vld [vmem:[%s0 + $0x20] sm:$0xff]
    %v26 = vld [vmem:[%s0 + $0x28] sm:$0xff]
    %v27 = vld [vmem:[%s0 + $0x30] sm:$0xff]
    %v28 = vld [vmem:[%s0 + $0x38] sm:$0xff]
    %v29 = vld [vmem:[%s0 + $0x40] sm:$0xff]
    %v30 = vld [vmem:[%s0 + $0x48] sm:$0xff]
    %v31 = vld [vmem:[%s0 + $0x50] sm:$0xff]
    %v32 = vld [vmem:[%s0 + $0x58] sm:$0xff]
    %v33 = vld [vmem:[%s0 + $0x60] sm:$0xff]
    %v34 = vld [vmem:[%s0 + $0x68] sm:$0xff]
    %v35 = vld [vmem:[%s0 + $0x70] sm:$0xff]
    %v36 = vld [vmem:[%s0 + $0x78] sm:$0xff]
    %vm37 = vcmask 130048
    %38 = vst.msk [vmem:[#allocation2] sm:$0xff] %vm37, 0.0
    %39 = vst.msk [vmem:[#allocation2 + $0x8] sm:$0xff] %vm37, 0.0
    %40 = vst.msk [vmem:[#allocation2 + $0x10] sm:$0xff] %vm37, 0.0
    %41 = vst.msk [vmem:[#allocation2 + $0x18] sm:$0xff] %vm37, 0.0
    %42 = vst.msk [vmem:[#allocation2 + $0x60] sm:$0xff] %vm37, 0.0
    %43 = vst.msk [vmem:[#allocation2 + $0x68] sm:$0xff] %vm37, 0.0
    %44 = vst.msk [vmem:[#allocation2 + $0x70] sm:$0xff] %vm37, 0.0
    %45 = vst.msk [vmem:[#allocation2 + $0x78] sm:$0xff] %vm37, 0.0
    %s46 = scalar_lea.vmem [#allocation2], 32
    %47 = vst.msk [vmem:[%s46] sm:$0xff] %vm37, %v21
    %48 = vst.msk [vmem:[%s46 + $0x8] sm:$0xff] %vm37, %v22
    %49 = vst.msk [vmem:[%s46 + $0x10] sm:$0xff] %vm37, %v23
    %50 = vst.msk [vmem:[%s46 + $0x18] sm:$0xff] %vm37, %v24
    %51 = vst.msk [vmem:[%s46 + $0x20] sm:$0xff] %vm37, %v25
    %52 = vst.msk [vmem:[%s46 + $0x28] sm:$0xff] %vm37, %v26
    %53 = vst.msk [vmem:[%s46 + $0x30] sm:$0xff] %vm37, %v27
    %54 = vst.msk [vmem:[%s46 + $0x38] sm:$0xff] %vm37, %v28
    %55 = vst.msk [vmem:[%s46 + $0x60] sm:$0xff] %vm37, %v29
    %56 = vst.msk [vmem:[%s46 + $0x68] sm:$0xff] %vm37, %v30
    %57 = vst.msk [vmem:[%s46 + $0x70] sm:$0xff] %vm37, %v31
    %58 = vst.msk [vmem:[%s46 + $0x78] sm:$0xff] %vm37, %v32
    %59 = vst.msk [vmem:[%s46 + $0x80] sm:$0xff] %vm37, %v33
    %60 = vst.msk [vmem:[%s46 + $0x88] sm:$0xff] %vm37, %v34
    %61 = vst.msk [vmem:[%s46 + $0x90] sm:$0xff] %vm37, %v35
    %62 = vst.msk [vmem:[%s46 + $0x98] sm:$0xff] %vm37, %v36
    %v63 = vld [vmem:[#allocation2] sm:$0xff]
    %v64 = vld [vmem:[#allocation2 + $0x8] sm:$0xff]
    %v65 = vld [vmem:[#allocation2 + $0x10] sm:$0xff]
    %v66 = vld [vmem:[#allocation2 + $0x18] sm:$0xff]
    %v67 = vld [vmem:[#allocation2 + $0x20] sm:$0xff]
    %v68 = vld [vmem:[#allocation2 + $0x28] sm:$0xff]
    %v69 = vld [vmem:[#allocation2 + $0x30] sm:$0xff]
    %v70 = vld [vmem:[#allocation2 + $0x38] sm:$0xff]
    %v71 = vld [vmem:[#allocation2 + $0x60] sm:$0xff]
    %v72 = vld [vmem:[#allocation2 + $0x68] sm:$0xff]
    %v73 = vld [vmem:[#allocation2 + $0x70] sm:$0xff]
    %v74 = vld [vmem:[#allocation2 + $0x78] sm:$0xff]
    %v75 = vld [vmem:[#allocation2 + $0x80] sm:$0xff]
    %v76 = vld [vmem:[#allocation2 + $0x88] sm:$0xff]
    %v77 = vld [vmem:[#allocation2 + $0x90] sm:$0xff]
    %v78 = vld [vmem:[#allocation2 + $0x98] sm:$0xff]
    %v79 = vld [vmem:[%s1] sm:$0xff]
    %v80 = vld [vmem:[%s1 + $0x8] sm:$0xff]
    %s81 = scalar_lea.vmem [#allocation2], 16
    %v82 = vld [vmem:[%s81] sm:$0xff]
    %v83 = vld [vmem:[%s81 + $0x8] sm:$0xff]
    %v84 = vld [vmem:[%s81 + $0x10] sm:$0xff]
    %v85 = vld [vmem:[%s81 + $0x18] sm:$0xff]
    %v86 = vld [vmem:[%s81 + $0x20] sm:$0xff]
    %v87 = vld [vmem:[%s81 + $0x28] sm:$0xff]
    %v88 = vld [vmem:[%s81 + $0x30] sm:$0xff]
    %v89 = vld [vmem:[%s81 + $0x38] sm:$0xff]
    %v90 = vld [vmem:[%s81 + $0x60] sm:$0xff]
    %v91 = vld [vmem:[%s81 + $0x68] sm:$0xff]
    %v92 = vld [vmem:[%s81 + $0x70] sm:$0xff]
    %v93 = vld [vmem:[%s81 + $0x78] sm:$0xff]
    %v94 = vld [vmem:[%s81 + $0x80] sm:$0xff]
    %v95 = vld [vmem:[%s81 + $0x88] sm:$0xff]
    %v96 = vld [vmem:[%s81 + $0x90] sm:$0xff]
    %v97 = vld [vmem:[%s81 + $0x98] sm:$0xff]
    %s98 = scalar_lea.vmem %s1, 16
    %v99 = vld [vmem:[%s98] sm:$0xff]
    %v100 = vld [vmem:[%s98 + $0x8] sm:$0xff]
    %v102 = vsel %vm37, %v82, 0
    %v105 = vsel %vm37, %v83, 0
    %v108 = vsel %vm37, %v84, 0
    %v111 = vsel %vm37, %v85, 0
    %v114 = vsel %vm37, %v86, 0
    %v117 = vsel %vm37, %v87, 0
    %v120 = vsel %vm37, %v88, 0
    %v123 = vsel %vm37, %v89, 0
    %v126 = vsel %vm37, %v90, 0
    %v129 = vsel %vm37, %v91, 0
    %v132 = vsel %vm37, %v92, 0
    %v135 = vsel %vm37, %v93, 0
    %v138 = vsel %vm37, %v94, 0
    %v141 = vsel %vm37, %v95, 0
    %v144 = vsel %vm37, %v96, 0
    %v147 = vsel %vm37, %v97, 0
    %149 = vmatprep.subr.mxu0 0.0
    %150 = vmatpush1.msra.mxu0 %v99
    %151 = vmatprep.subr.mxu0 0.0
    %152 = vmatpush1.msra.mxu0 %v100
    %153 = vmatprep.subr.mxu0 0.0
    %154 = vmatpush1.msra.mxu0 0.0
    %155 = vmatprep.subr.mxu0 0.0
    %156 = vmatpush1.msra.mxu0 0.0
    %157 = vmatprep.subr.mxu0 0.0
    %158 = vmatpush1.msra.mxu0 0.0
    %159 = vmatprep.subr.mxu0 0.0
    %160 = vmatpush1.msra.mxu0 0.0
    %161 = vmatprep.subr.mxu0 0.0
    %162 = vmatpush1.msra.mxu0 0.0
    %163 = vmatprep.subr.mxu0 0.0
    %164 = vmatpush1.msra.mxu0 0.0
    %165 = vmatprep.subr.mxu0 0.0
    %166 = vmatpush1.msra.mxu0 0.0
    %167 = vmatprep.subr.mxu0 0.0
    %168 = vmatpush1.msra.mxu0 0.0
    %169 = vmatprep.subr.mxu0 0.0
    %170 = vmatpush1.msra.mxu0 0.0
    %171 = vmatprep.subr.mxu0 0.0
    %172 = vmatpush1.msra.mxu0 0.0
    %173 = vmatprep.subr.mxu0 0.0
    %174 = vmatpush1.msra.mxu0 0.0
    %175 = vmatprep.subr.mxu0 0.0
    %176 = vmatpush1.msra.mxu0 0.0
    %177 = vmatprep.subr.mxu0 0.0
    %178 = vmatpush1.msra.mxu0 0.0
    %179 = vmatprep.subr.mxu0 0.0
    %180 = vmatpush1.msra.mxu0 0.0
    %181 = vmatprep.subr.mxu0 0.0
    %182 = vmatpush1.msra.mxu0 0.0
    %183 = vmatprep.subr.mxu0 0.0
    %184 = vmatpush1.msra.mxu0 0.0
    %185 = vmatprep.subr.mxu0 0.0
    %186 = vmatpush1.msra.mxu0 0.0
    %187 = vmatprep.subr.mxu0 0.0
    %188 = vmatpush1.msra.mxu0 0.0
    %189 = vmatprep.subr.mxu0 0.0
    %190 = vmatpush1.msra.mxu0 0.0
    %191 = vmatprep.subr.mxu0 0.0
    %192 = vmatpush1.msra.mxu0 0.0
    %193 = vmatprep.subr.mxu0 0.0
    %194 = vmatpush1.msra.mxu0 0.0
    %195 = vmatprep.subr.mxu0 0.0
    %196 = vmatpush1.msra.mxu0 0.0
    %197 = vmatprep.subr.mxu0 0.0
    %198 = vmatpush1.msra.mxu0 0.0
    %199 = vmatprep.subr.mxu0 0.0
    %200 = vmatpush1.msra.mxu0 0.0
    %201 = vmatprep.subr.mxu0 0.0
    %202 = vmatpush1.msra.mxu0 0.0
    %203 = vmatprep.subr.mxu0 0.0
    %204 = vmatpush1.msra.mxu0 0.0
    %205 = vmatprep.subr.mxu0 0.0
    %206 = vmatpush1.msra.mxu0 0.0
    %207 = vmatprep.subr.mxu0 0.0
    %208 = vmatpush1.msra.mxu0 0.0
    %209 = vmatprep.subr.mxu0 0.0
    %210 = vmatpush1.msra.mxu0 0.0
    %211 = vmatprep.subr.mxu0 0.0
    %212 = vmatpush1.msra.mxu0 0.0
    %213 = vmatprep.mubr.f32.mxu0 0.0
    %214 = vmatmul.mubr.f32.gmra.mrb[0].mxu0 %v102
    %v215 = vpop.f32.mrb[0].mxu0
    %v216 = vadd.f32 0.0, %v215
    %v217 = vpop.f32.mrb[0].mxu0
    %218 = vmatprep.mubr.f32.mxu0 0.0
    %219 = vmatmul.mubr.f32.gmra.mrb[0].mxu0 %v105
    %v220 = vpop.f32.mrb[0].mxu0
    %v221 = vadd.f32 0.0, %v220
    %v222 = vpop.f32.mrb[0].mxu0
    %223 = vmatprep.mubr.f32.mxu0 0.0
    %224 = vmatmul.mubr.f32.gmra.mrb[0].mxu0 %v108
    %v225 = vpop.f32.mrb[0].mxu0
    %v226 = vadd.f32 0.0, %v225
    %v227 = vpop.f32.mrb[0].mxu0
    %228 = vmatprep.mubr.f32.mxu0 0.0
    %229 = vmatmul.mubr.f32.gmra.mrb[0].mxu0 %v111
    %v230 = vpop.f32.mrb[0].mxu0
    %v231 = vadd.f32 0.0, %v230
    %v232 = vpop.f32.mrb[0].mxu0
    %233 = vmatprep.mubr.f32.mxu0 0.0
    %234 = vmatmul.mubr.f32.gmra.mrb[0].mxu0 %v114
    %v235 = vpop.f32.mrb[0].mxu0
    %v236 = vadd.f32 0.0, %v235
    %v237 = vpop.f32.mrb[0].mxu0
    %238 = vmatprep.mubr.f32.mxu0 0.0
    %239 = vmatmul.mubr.f32.gmra.mrb[0].mxu0 %v117
    %v240 = vpop.f32.mrb[0].mxu0
    %v241 = vadd.f32 0.0, %v240
    %v242 = vpop.f32.mrb[0].mxu0
    %243 = vmatprep.mubr.f32.mxu0 0.0
    %244 = vmatmul.mubr.f32.gmra.mrb[0].mxu0 %v120
    %v245 = vpop.f32.mrb[0].mxu0
    %v246 = vadd.f32 0.0, %v245
    %v247 = vpop.f32.mrb[0].mxu0
    %248 = vmatprep.mubr.f32.mxu0 0.0
    %249 = vmatmul.mubr.f32.gmra.mrb[0].mxu0 %v123
    %v250 = vpop.f32.mrb[0].mxu0
    %v251 = vadd.f32 0.0, %v250
    %v252 = vpop.f32.mrb[0].mxu0
    %253 = vmatprep.mubr.f32.mxu0 0.0
    %254 = vmatmul.mubr.f32.gmra.mrb[0].mxu0 %v126
    %v255 = vpop.f32.mrb[0].mxu0
    %v256 = vadd.f32 0.0, %v255
    %v257 = vpop.f32.mrb[0].mxu0
    %258 = vmatprep.mubr.f32.mxu0 0.0
    %259 = vmatmul.mubr.f32.gmra.mrb[0].mxu0 %v129
    %v260 = vpop.f32.mrb[0].mxu0
    %v261 = vadd.f32 0.0, %v260
    %v262 = vpop.f32.mrb[0].mxu0
    %263 = vmatprep.mubr.f32.mxu0 0.0
    %264 = vmatmul.mubr.f32.gmra.mrb[0].mxu0 %v132
    %v265 = vpop.f32.mrb[0].mxu0
    %v266 = vadd.f32 0.0, %v265
    %v267 = vpop.f32.mrb[0].mxu0
    %268 = vmatprep.mubr.f32.mxu0 0.0
    %269 = vmatmul.mubr.f32.gmra.mrb[0].mxu0 %v135
    %v270 = vpop.f32.mrb[0].mxu0
    %v271 = vadd.f32 0.0, %v270
    %v272 = vpop.f32.mrb[0].mxu0
    %273 = vmatprep.mubr.f32.mxu0 0.0
    %274 = vmatmul.mubr.f32.gmra.mrb[0].mxu0 %v138
    %v275 = vpop.f32.mrb[0].mxu0
    %v276 = vadd.f32 0.0, %v275
    %v277 = vpop.f32.mrb[0].mxu0
    %278 = vmatprep.mubr.f32.mxu0 0.0
    %279 = vmatmul.mubr.f32.gmra.mrb[0].mxu0 %v141
    %v280 = vpop.f32.mrb[0].mxu0
    %v281 = vadd.f32 0.0, %v280
    %v282 = vpop.f32.mrb[0].mxu0
    %283 = vmatprep.mubr.f32.mxu0 0.0
    %284 = vmatmul.mubr.f32.gmra.mrb[0].mxu0 %v144
    %v285 = vpop.f32.mrb[0].mxu0
    %v286 = vadd.f32 0.0, %v285
    %v287 = vpop.f32.mrb[0].mxu0
    %288 = vmatprep.mubr.f32.mxu0 0.0
    %289 = vmatmul.mubr.f32.gmra.mrb[0].mxu0 %v147
    %v290 = vpop.f32.mrb[0].mxu0
    %v291 = vadd.f32 0.0, %v290
    %v292 = vpop.f32.mrb[0].mxu0
    %293 = vdwg.mxu0
    %v295 = vsel %vm37, %v63, 0
    %v298 = vsel %vm37, %v64, 0
    %v301 = vsel %vm37, %v65, 0
    %v304 = vsel %vm37, %v66, 0
    %v307 = vsel %vm37, %v67, 0
    %v310 = vsel %vm37, %v68, 0
    %v313 = vsel %vm37, %v69, 0
    %v316 = vsel %vm37, %v70, 0
    %v319 = vsel %vm37, %v71, 0
    %v322 = vsel %vm37, %v72, 0
    %v325 = vsel %vm37, %v73, 0
    %v328 = vsel %vm37, %v74, 0
    %v331 = vsel %vm37, %v75, 0
    %v334 = vsel %vm37, %v76, 0
    %v337 = vsel %vm37, %v77, 0
    %v340 = vsel %vm37, %v78, 0
    %342 = vmatprep.subr.mxu0 0.0
    %343 = vmatpush1.msra.mxu0 %v79
    %344 = vmatprep.subr.mxu0 0.0
    %345 = vmatpush1.msra.mxu0 %v80
    %346 = vmatprep.subr.mxu0 0.0
    %347 = vmatpush1.msra.mxu0 0.0
    %348 = vmatprep.subr.mxu0 0.0
    %349 = vmatpush1.msra.mxu0 0.0
    %350 = vmatprep.subr.mxu0 0.0
    %351 = vmatpush1.msra.mxu0 0.0
    %352 = vmatprep.subr.mxu0 0.0
    %353 = vmatpush1.msra.mxu0 0.0
    %354 = vmatprep.subr.mxu0 0.0
    %355 = vmatpush1.msra.mxu0 0.0
    %356 = vmatprep.subr.mxu0 0.0
    %357 = vmatpush1.msra.mxu0 0.0
    %358 = vmatprep.subr.mxu0 0.0
    %359 = vmatpush1.msra.mxu0 0.0
    %360 = vmatprep.subr.mxu0 0.0
    %361 = vmatpush1.msra.mxu0 0.0
    %362 = vmatprep.subr.mxu0 0.0
    %363 = vmatpush1.msra.mxu0 0.0
    %364 = vmatprep.subr.mxu0 0.0
    %365 = vmatpush1.msra.mxu0 0.0
    %366 = vmatprep.subr.mxu0 0.0
    %367 = vmatpush1.msra.mxu0 0.0
    %368 = vmatprep.subr.mxu0 0.0
    %369 = vmatpush1.msra.mxu0 0.0
    %370 = vmatprep.subr.mxu0 0.0
    %371 = vmatpush1.msra.mxu0 0.0
    %372 = vmatprep.subr.mxu0 0.0
    %373 = vmatpush1.msra.mxu0 0.0
    %374 = vmatprep.subr.mxu0 0.0
    %375 = vmatpush1.msra.mxu0 0.0
    %376 = vmatprep.subr.mxu0 0.0
    %377 = vmatpush1.msra.mxu0 0.0
    %378 = vmatprep.subr.mxu0 0.0
    %379 = vmatpush1.msra.mxu0 0.0
    %380 = vmatprep.subr.mxu0 0.0
    %381 = vmatpush1.msra.mxu0 0.0
    %382 = vmatprep.subr.mxu0 0.0
    %383 = vmatpush1.msra.mxu0 0.0
    %384 = vmatprep.subr.mxu0 0.0
    %385 = vmatpush1.msra.mxu0 0.0
    %386 = vmatprep.subr.mxu0 0.0
    %387 = vmatpush1.msra.mxu0 0.0
    %388 = vmatprep.subr.mxu0 0.0
    %389 = vmatpush1.msra.mxu0 0.0
    %390 = vmatprep.subr.mxu0 0.0
    %391 = vmatpush1.msra.mxu0 0.0
    %392 = vmatprep.subr.mxu0 0.0
    %393 = vmatpush1.msra.mxu0 0.0
    %394 = vmatprep.subr.mxu0 0.0
    %395 = vmatpush1.msra.mxu0 0.0
    %396 = vmatprep.subr.mxu0 0.0
    %397 = vmatpush1.msra.mxu0 0.0
    %398 = vmatprep.subr.mxu0 0.0
    %399 = vmatpush1.msra.mxu0 0.0
    %400 = vmatprep.subr.mxu0 0.0
    %401 = vmatpush1.msra.mxu0 0.0
    %402 = vmatprep.subr.mxu0 0.0
    %403 = vmatpush1.msra.mxu0 0.0
    %404 = vmatprep.subr.mxu0 0.0
    %405 = vmatpush1.msra.mxu0 0.0
    %406 = vmatprep.mubr.f32.mxu0 0.0
    %407 = vmatmul.mubr.f32.gmra.mrb[0].mxu0 %v295
    %v408 = vpop.f32.mrb[0].mxu0
    %v409 = vadd.f32 %v216, %v408
    %v410 = vpop.f32.mrb[0].mxu0
    %411 = vmatprep.mubr.f32.mxu0 0.0
    %412 = vmatmul.mubr.f32.gmra.mrb[0].mxu0 %v298
    %v413 = vpop.f32.mrb[0].mxu0
    %v414 = vadd.f32 %v221, %v413
    %v415 = vpop.f32.mrb[0].mxu0
    %416 = vmatprep.mubr.f32.mxu0 0.0
    %417 = vmatmul.mubr.f32.gmra.mrb[0].mxu0 %v301
    %v418 = vpop.f32.mrb[0].mxu0
    %v419 = vadd.f32 %v226, %v418
    %v420 = vpop.f32.mrb[0].mxu0
    %421 = vmatprep.mubr.f32.mxu0 0.0
    %422 = vmatmul.mubr.f32.gmra.mrb[0].mxu0 %v304
    %v423 = vpop.f32.mrb[0].mxu0
    %v424 = vadd.f32 %v231, %v423
    %v425 = vpop.f32.mrb[0].mxu0
    %426 = vmatprep.mubr.f32.mxu0 0.0
    %427 = vmatmul.mubr.f32.gmra.mrb[0].mxu0 %v307
    %v428 = vpop.f32.mrb[0].mxu0
    %v429 = vadd.f32 %v236, %v428
    %v430 = vpop.f32.mrb[0].mxu0
    %431 = vmatprep.mubr.f32.mxu0 0.0
    %432 = vmatmul.mubr.f32.gmra.mrb[0].mxu0 %v310
    %v433 = vpop.f32.mrb[0].mxu0
    %v434 = vadd.f32 %v241, %v433
    %v435 = vpop.f32.mrb[0].mxu0
    %436 = vmatprep.mubr.f32.mxu0 0.0
    %437 = vmatmul.mubr.f32.gmra.mrb[0].mxu0 %v313
    %v438 = vpop.f32.mrb[0].mxu0
    %v439 = vadd.f32 %v246, %v438
    %v440 = vpop.f32.mrb[0].mxu0
    %441 = vmatprep.mubr.f32.mxu0 0.0
    %442 = vmatmul.mubr.f32.gmra.mrb[0].mxu0 %v316
    %v443 = vpop.f32.mrb[0].mxu0
    %v444 = vadd.f32 %v251, %v443
    %v445 = vpop.f32.mrb[0].mxu0
    %446 = vmatprep.mubr.f32.mxu0 0.0
    %447 = vmatmul.mubr.f32.gmra.mrb[0].mxu0 %v319
    %v448 = vpop.f32.mrb[0].mxu0
    %v449 = vadd.f32 %v256, %v448
    %v450 = vpop.f32.mrb[0].mxu0
    %451 = vmatprep.mubr.f32.mxu0 0.0
    %452 = vmatmul.mubr.f32.gmra.mrb[0].mxu0 %v322
    %v453 = vpop.f32.mrb[0].mxu0
    %v454 = vadd.f32 %v261, %v453
    %v455 = vpop.f32.mrb[0].mxu0
    %456 = vmatprep.mubr.f32.mxu0 0.0
    %457 = vmatmul.mubr.f32.gmra.mrb[0].mxu0 %v325
    %v458 = vpop.f32.mrb[0].mxu0
    %v459 = vadd.f32 %v266, %v458
    %v460 = vpop.f32.mrb[0].mxu0
    %461 = vmatprep.mubr.f32.mxu0 0.0
    %462 = vmatmul.mubr.f32.gmra.mrb[0].mxu0 %v328
    %v463 = vpop.f32.mrb[0].mxu0
    %v464 = vadd.f32 %v271, %v463
    %v465 = vpop.f32.mrb[0].mxu0
    %466 = vmatprep.mubr.f32.mxu0 0.0
    %467 = vmatmul.mubr.f32.gmra.mrb[0].mxu0 %v331
    %v468 = vpop.f32.mrb[0].mxu0
    %v469 = vadd.f32 %v276, %v468
    %v470 = vpop.f32.mrb[0].mxu0
    %471 = vmatprep.mubr.f32.mxu0 0.0
    %472 = vmatmul.mubr.f32.gmra.mrb[0].mxu0 %v334
    %v473 = vpop.f32.mrb[0].mxu0
    %v474 = vadd.f32 %v281, %v473
    %v475 = vpop.f32.mrb[0].mxu0
    %476 = vmatprep.mubr.f32.mxu0 0.0
    %477 = vmatmul.mubr.f32.gmra.mrb[0].mxu0 %v337
    %v478 = vpop.f32.mrb[0].mxu0
    %v479 = vadd.f32 %v286, %v478
    %v480 = vpop.f32.mrb[0].mxu0
    %481 = vmatprep.mubr.f32.mxu0 0.0
    %482 = vmatmul.mubr.f32.gmra.mrb[0].mxu0 %v340
    %v483 = vpop.f32.mrb[0].mxu0
    %v484 = vadd.f32 %v291, %v483
    %v485 = vpop.f32.mrb[0].mxu0
    %486 = vdwg.mxu0
    %v487 = vld [vmem:[%s46] sm:$0xff]
    %v488 = vld [vmem:[%s46 + $0x8] sm:$0xff]
    %v489 = vld [vmem:[%s46 + $0x10] sm:$0xff]
    %v490 = vld [vmem:[%s46 + $0x18] sm:$0xff]
    %v491 = vld [vmem:[%s46 + $0x20] sm:$0xff]
    %v492 = vld [vmem:[%s46 + $0x28] sm:$0xff]
    %v493 = vld [vmem:[%s46 + $0x30] sm:$0xff]
    %v494 = vld [vmem:[%s46 + $0x38] sm:$0xff]
    %v495 = vld [vmem:[%s46 + $0x60] sm:$0xff]
    %v496 = vld [vmem:[%s46 + $0x68] sm:$0xff]
    %v497 = vld [vmem:[%s46 + $0x70] sm:$0xff]
    %v498 = vld [vmem:[%s46 + $0x78] sm:$0xff]
    %v499 = vld [vmem:[%s46 + $0x80] sm:$0xff]
    %v500 = vld [vmem:[%s46 + $0x88] sm:$0xff]
    %v501 = vld [vmem:[%s46 + $0x90] sm:$0xff]
    %v502 = vld [vmem:[%s46 + $0x98] sm:$0xff]
    %s503 = scalar_lea.vmem %s1, 32
    %v504 = vld [vmem:[%s503] sm:$0xff]
    %v505 = vld [vmem:[%s503 + $0x8] sm:$0xff]
    %v507 = vsel %vm37, %v487, 0
    %v510 = vsel %vm37, %v488, 0
    %v513 = vsel %vm37, %v489, 0
    %v516 = vsel %vm37, %v490, 0
    %v519 = vsel %vm37, %v491, 0
    %v522 = vsel %vm37, %v492, 0
    %v525 = vsel %vm37, %v493, 0
    %v528 = vsel %vm37, %v494, 0
    %v531 = vsel %vm37, %v495, 0
    %v534 = vsel %vm37, %v496, 0
    %v537 = vsel %vm37, %v497, 0
    %v540 = vsel %vm37, %v498, 0
    %v543 = vsel %vm37, %v499, 0
    %v546 = vsel %vm37, %v500, 0
    %v549 = vsel %vm37, %v501, 0
    %v552 = vsel %vm37, %v502, 0
    %554 = vmatprep.subr.mxu0 0.0
    %555 = vmatpush1.msra.mxu0 %v504
    %556 = vmatprep.subr.mxu0 0.0
    %557 = vmatpush1.msra.mxu0 %v505
    %558 = vmatprep.subr.mxu0 0.0
    %559 = vmatpush1.msra.mxu0 0.0
    %560 = vmatprep.subr.mxu0 0.0
    %561 = vmatpush1.msra.mxu0 0.0
    %562 = vmatprep.subr.mxu0 0.0
    %563 = vmatpush1.msra.mxu0 0.0
    %564 = vmatprep.subr.mxu0 0.0
    %565 = vmatpush1.msra.mxu0 0.0
    %566 = vmatprep.subr.mxu0 0.0
    %567 = vmatpush1.msra.mxu0 0.0
    %568 = vmatprep.subr.mxu0 0.0
    %569 = vmatpush1.msra.mxu0 0.0
    %570 = vmatprep.subr.mxu0 0.0
    %571 = vmatpush1.msra.mxu0 0.0
    %572 = vmatprep.subr.mxu0 0.0
    %573 = vmatpush1.msra.mxu0 0.0
    %574 = vmatprep.subr.mxu0 0.0
    %575 = vmatpush1.msra.mxu0 0.0
    %576 = vmatprep.subr.mxu0 0.0
    %577 = vmatpush1.msra.mxu0 0.0
    %578 = vmatprep.subr.mxu0 0.0
    %579 = vmatpush1.msra.mxu0 0.0
    %580 = vmatprep.subr.mxu0 0.0
    %581 = vmatpush1.msra.mxu0 0.0
    %582 = vmatprep.subr.mxu0 0.0
    %583 = vmatpush1.msra.mxu0 0.0
    %584 = vmatprep.subr.mxu0 0.0
    %585 = vmatpush1.msra.mxu0 0.0
    %586 = vmatprep.subr.mxu0 0.0
    %587 = vmatpush1.msra.mxu0 0.0
    %588 = vmatprep.subr.mxu0 0.0
    %589 = vmatpush1.msra.mxu0 0.0
    %590 = vmatprep.subr.mxu0 0.0
    %591 = vmatpush1.msra.mxu0 0.0
    %592 = vmatprep.subr.mxu0 0.0
    %593 = vmatpush1.msra.mxu0 0.0
    %594 = vmatprep.subr.mxu0 0.0
    %595 = vmatpush1.msra.mxu0 0.0
    %596 = vmatprep.subr.mxu0 0.0
    %597 = vmatpush1.msra.mxu0 0.0
    %598 = vmatprep.subr.mxu0 0.0
    %599 = vmatpush1.msra.mxu0 0.0
    %600 = vmatprep.subr.mxu0 0.0
    %601 = vmatpush1.msra.mxu0 0.0
    %602 = vmatprep.subr.mxu0 0.0
    %603 = vmatpush1.msra.mxu0 0.0
    %604 = vmatprep.subr.mxu0 0.0
    %605 = vmatpush1.msra.mxu0 0.0
    %606 = vmatprep.subr.mxu0 0.0
    %607 = vmatpush1.msra.mxu0 0.0
    %608 = vmatprep.subr.mxu0 0.0
    %609 = vmatpush1.msra.mxu0 0.0
    %610 = vmatprep.subr.mxu0 0.0
    %611 = vmatpush1.msra.mxu0 0.0
    %612 = vmatprep.subr.mxu0 0.0
    %613 = vmatpush1.msra.mxu0 0.0
    %614 = vmatprep.subr.mxu0 0.0
    %615 = vmatpush1.msra.mxu0 0.0
    %616 = vmatprep.subr.mxu0 0.0
    %617 = vmatpush1.msra.mxu0 0.0
    %618 = vmatprep.mubr.f32.mxu0 0.0
    %619 = vmatmul.mubr.f32.gmra.mrb[0].mxu0 %v507
    %v620 = vpop.f32.mrb[0].mxu0
    %v621 = vadd.f32 0.0, %v620
    %v622 = vpop.f32.mrb[0].mxu0
    %623 = vmatprep.mubr.f32.mxu0 0.0
    %624 = vmatmul.mubr.f32.gmra.mrb[0].mxu0 %v510
    %v625 = vpop.f32.mrb[0].mxu0
    %v626 = vadd.f32 0.0, %v625
    %v627 = vpop.f32.mrb[0].mxu0
    %628 = vmatprep.mubr.f32.mxu0 0.0
    %629 = vmatmul.mubr.f32.gmra.mrb[0].mxu0 %v513
    %v630 = vpop.f32.mrb[0].mxu0
    %v631 = vadd.f32 0.0, %v630
    %v632 = vpop.f32.mrb[0].mxu0
    %633 = vmatprep.mubr.f32.mxu0 0.0
    %634 = vmatmul.mubr.f32.gmra.mrb[0].mxu0 %v516
    %v635 = vpop.f32.mrb[0].mxu0
    %v636 = vadd.f32 0.0, %v635
    %v637 = vpop.f32.mrb[0].mxu0
    %638 = vmatprep.mubr.f32.mxu0 0.0
    %639 = vmatmul.mubr.f32.gmra.mrb[0].mxu0 %v519
    %v640 = vpop.f32.mrb[0].mxu0
    %v641 = vadd.f32 0.0, %v640
    %v642 = vpop.f32.mrb[0].mxu0
    %643 = vmatprep.mubr.f32.mxu0 0.0
    %644 = vmatmul.mubr.f32.gmra.mrb[0].mxu0 %v522
    %v645 = vpop.f32.mrb[0].mxu0
    %v646 = vadd.f32 0.0, %v645
    %v647 = vpop.f32.mrb[0].mxu0
    %648 = vmatprep.mubr.f32.mxu0 0.0
    %649 = vmatmul.mubr.f32.gmra.mrb[0].mxu0 %v525
    %v650 = vpop.f32.mrb[0].mxu0
    %v651 = vadd.f32 0.0, %v650
    %v652 = vpop.f32.mrb[0].mxu0
    %653 = vmatprep.mubr.f32.mxu0 0.0
    %654 = vmatmul.mubr.f32.gmra.mrb[0].mxu0 %v528
    %v655 = vpop.f32.mrb[0].mxu0
    %v656 = vadd.f32 0.0, %v655
    %v657 = vpop.f32.mrb[0].mxu0
    %658 = vmatprep.mubr.f32.mxu0 0.0
    %659 = vmatmul.mubr.f32.gmra.mrb[0].mxu0 %v531
    %v660 = vpop.f32.mrb[0].mxu0
    %v661 = vadd.f32 0.0, %v660
    %v662 = vpop.f32.mrb[0].mxu0
    %663 = vmatprep.mubr.f32.mxu0 0.0
    %664 = vmatmul.mubr.f32.gmra.mrb[0].mxu0 %v534
    %v665 = vpop.f32.mrb[0].mxu0
    %v666 = vadd.f32 0.0, %v665
    %v667 = vpop.f32.mrb[0].mxu0
    %668 = vmatprep.mubr.f32.mxu0 0.0
    %669 = vmatmul.mubr.f32.gmra.mrb[0].mxu0 %v537
    %v670 = vpop.f32.mrb[0].mxu0
    %v671 = vadd.f32 0.0, %v670
    %v672 = vpop.f32.mrb[0].mxu0
    %673 = vmatprep.mubr.f32.mxu0 0.0
    %674 = vmatmul.mubr.f32.gmra.mrb[0].mxu0 %v540
    %v675 = vpop.f32.mrb[0].mxu0
    %v676 = vadd.f32 0.0, %v675
    %v677 = vpop.f32.mrb[0].mxu0
    %678 = vmatprep.mubr.f32.mxu0 0.0
    %679 = vmatmul.mubr.f32.gmra.mrb[0].mxu0 %v543
    %v680 = vpop.f32.mrb[0].mxu0
    %v681 = vadd.f32 0.0, %v680
    %v682 = vpop.f32.mrb[0].mxu0
    %683 = vmatprep.mubr.f32.mxu0 0.0
    %684 = vmatmul.mubr.f32.gmra.mrb[0].mxu0 %v546
    %v685 = vpop.f32.mrb[0].mxu0
    %v686 = vadd.f32 0.0, %v685
    %v687 = vpop.f32.mrb[0].mxu0
    %688 = vmatprep.mubr.f32.mxu0 0.0
    %689 = vmatmul.mubr.f32.gmra.mrb[0].mxu0 %v549
    %v690 = vpop.f32.mrb[0].mxu0
    %v691 = vadd.f32 0.0, %v690
    %v692 = vpop.f32.mrb[0].mxu0
    %693 = vmatprep.mubr.f32.mxu0 0.0
    %694 = vmatmul.mubr.f32.gmra.mrb[0].mxu0 %v552
    %v695 = vpop.f32.mrb[0].mxu0
    %v696 = vadd.f32 0.0, %v695
    %v697 = vpop.f32.mrb[0].mxu0
    %698 = vdwg.mxu0
    %v699 = vadd.f32 %v409, %v621
    %v700 = vadd.f32 %v414, %v626
    %v701 = vadd.f32 %v419, %v631
    %v702 = vadd.f32 %v424, %v636
    %v703 = vadd.f32 %v429, %v641
    %v704 = vadd.f32 %v434, %v646
    %v705 = vadd.f32 %v439, %v651
    %v706 = vadd.f32 %v444, %v656
    %v707 = vadd.f32 %v449, %v661
    %v708 = vadd.f32 %v454, %v666
    %v709 = vadd.f32 %v459, %v671
    %v710 = vadd.f32 %v464, %v676
    %v711 = vadd.f32 %v469, %v681
    %v712 = vadd.f32 %v474, %v686
    %v713 = vadd.f32 %v479, %v691
    %v714 = vadd.f32 %v484, %v696
    %vm715 = vcmask 261120
    %716 = vst.msk [vmem:[#allocation3] sm:$0xff] %vm715, 0.0
    %717 = vst.msk [vmem:[#allocation3 + $0x8] sm:$0xff] %vm715, 0.0
    %718 = vst.msk [vmem:[#allocation3 + $0x10] sm:$0xff] %vm715, 0.0
    %719 = vst.msk [vmem:[#allocation3 + $0x18] sm:$0xff] %vm715, 0.0
    %720 = vst.msk [vmem:[#allocation3 + $0x60] sm:$0xff] %vm715, 0.0
    %721 = vst.msk [vmem:[#allocation3 + $0x68] sm:$0xff] %vm715, 0.0
    %722 = vst.msk [vmem:[#allocation3 + $0x70] sm:$0xff] %vm715, 0.0
    %723 = vst.msk [vmem:[#allocation3 + $0x78] sm:$0xff] %vm715, 0.0
    %s724 = scalar_lea.vmem [#allocation3], 32
    %725 = vst.msk [vmem:[%s724] sm:$0xff] %vm715, %v699
    %726 = vst.msk [vmem:[%s724 + $0x8] sm:$0xff] %vm715, %v700
    %727 = vst.msk [vmem:[%s724 + $0x10] sm:$0xff] %vm715, %v701
    %728 = vst.msk [vmem:[%s724 + $0x18] sm:$0xff] %vm715, %v702
    %729 = vst.msk [vmem:[%s724 + $0x20] sm:$0xff] %vm715, %v703
    %730 = vst.msk [vmem:[%s724 + $0x28] sm:$0xff] %vm715, %v704
    %731 = vst.msk [vmem:[%s724 + $0x30] sm:$0xff] %vm715, %v705
    %732 = vst.msk [vmem:[%s724 + $0x38] sm:$0xff] %vm715, %v706
    %733 = vst.msk [vmem:[%s724 + $0x60] sm:$0xff] %vm715, %v707
    %734 = vst.msk [vmem:[%s724 + $0x68] sm:$0xff] %vm715, %v708
    %735 = vst.msk [vmem:[%s724 + $0x70] sm:$0xff] %vm715, %v709
    %736 = vst.msk [vmem:[%s724 + $0x78] sm:$0xff] %vm715, %v710
    %737 = vst.msk [vmem:[%s724 + $0x80] sm:$0xff] %vm715, %v711
    %738 = vst.msk [vmem:[%s724 + $0x88] sm:$0xff] %vm715, %v712
    %739 = vst.msk [vmem:[%s724 + $0x90] sm:$0xff] %vm715, %v713
    %740 = vst.msk [vmem:[%s724 + $0x98] sm:$0xff] %vm715, %v714
    %v741 = vld [vmem:[#allocation3] sm:$0xff]
    %v742 = vld [vmem:[#allocation3 + $0x8] sm:$0xff]
    %v743 = vld [vmem:[#allocation3 + $0x10] sm:$0xff]
    %v744 = vld [vmem:[#allocation3 + $0x18] sm:$0xff]
    %v745 = vld [vmem:[#allocation3 + $0x20] sm:$0xff]
    %v746 = vld [vmem:[#allocation3 + $0x28] sm:$0xff]
    %v747 = vld [vmem:[#allocation3 + $0x30] sm:$0xff]
    %v748 = vld [vmem:[#allocation3 + $0x38] sm:$0xff]
    %v749 = vld [vmem:[#allocation3 + $0x60] sm:$0xff]
    %v750 = vld [vmem:[#allocation3 + $0x68] sm:$0xff]
    %v751 = vld [vmem:[#allocation3 + $0x70] sm:$0xff]
    %v752 = vld [vmem:[#allocation3 + $0x78] sm:$0xff]
    %v753 = vld [vmem:[#allocation3 + $0x80] sm:$0xff]
    %v754 = vld [vmem:[#allocation3 + $0x88] sm:$0xff]
    %v755 = vld [vmem:[#allocation3 + $0x90] sm:$0xff]
    %v756 = vld [vmem:[#allocation3 + $0x98] sm:$0xff]
    %v757 = vld [vmem:[%s2] sm:$0xff]
    %v758 = vld [vmem:[%s2 + $0x8] sm:$0xff]
    %v759 = vld [vmem:[%s2 + $0x10] sm:$0xff]
    %v760 = vld [vmem:[%s2 + $0x18] sm:$0xff]
    %s761 = scalar_lea.vmem [#allocation3], 16
    %v762 = vld [vmem:[%s761] sm:$0xff]
    %v763 = vld [vmem:[%s761 + $0x8] sm:$0xff]
    %v764 = vld [vmem:[%s761 + $0x10] sm:$0xff]
    %v765 = vld [vmem:[%s761 + $0x18] sm:$0xff]
    %v766 = vld [vmem:[%s761 + $0x20] sm:$0xff]
    %v767 = vld [vmem:[%s761 + $0x28] sm:$0xff]
    %v768 = vld [vmem:[%s761 + $0x30] sm:$0xff]
    %v769 = vld [vmem:[%s761 + $0x38] sm:$0xff]
    %v770 = vld [vmem:[%s761 + $0x60] sm:$0xff]
    %v771 = vld [vmem:[%s761 + $0x68] sm:$0xff]
    %v772 = vld [vmem:[%s761 + $0x70] sm:$0xff]
    %v773 = vld [vmem:[%s761 + $0x78] sm:$0xff]
    %v774 = vld [vmem:[%s761 + $0x80] sm:$0xff]
    %v775 = vld [vmem:[%s761 + $0x88] sm:$0xff]
    %v776 = vld [vmem:[%s761 + $0x90] sm:$0xff]
    %v777 = vld [vmem:[%s761 + $0x98] sm:$0xff]
    %s778 = scalar_lea.vmem %s2, 32
    %v779 = vld [vmem:[%s778] sm:$0xff]
    %v780 = vld [vmem:[%s778 + $0x8] sm:$0xff]
    %v781 = vld [vmem:[%s778 + $0x10] sm:$0xff]
    %v782 = vld [vmem:[%s778 + $0x18] sm:$0xff]
    %v784 = vsel %vm715, %v762, 0
    %v787 = vsel %vm715, %v763, 0
    %v790 = vsel %vm715, %v764, 0
    %v793 = vsel %vm715, %v765, 0
    %v796 = vsel %vm715, %v766, 0
    %v799 = vsel %vm715, %v767, 0
    %v802 = vsel %vm715, %v768, 0
    %v805 = vsel %vm715, %v769, 0
    %v808 = vsel %vm715, %v770, 0
    %v811 = vsel %vm715, %v771, 0
    %v814 = vsel %vm715, %v772, 0
    %v817 = vsel %vm715, %v773, 0
    %v820 = vsel %vm715, %v774, 0
    %v823 = vsel %vm715, %v775, 0
    %v826 = vsel %vm715, %v776, 0
    %v829 = vsel %vm715, %v777, 0
    %831 = vmatprep.subr.mxu0 0.0
    %832 = vmatpush1.msra.mxu0 %v779
    %833 = vmatprep.subr.mxu0 0.0
    %834 = vmatpush1.msra.mxu0 %v780
    %835 = vmatprep.subr.mxu0 0.0
    %836 = vmatpush1.msra.mxu0 %v781
    %837 = vmatprep.subr.mxu0 0.0
    %838 = vmatpush1.msra.mxu0 %v782
    %839 = vmatprep.subr.mxu0 0.0
    %840 = vmatpush1.msra.mxu0 0.0
    %841 = vmatprep.subr.mxu0 0.0
    %842 = vmatpush1.msra.mxu0 0.0
    %843 = vmatprep.subr.mxu0 0.0
    %844 = vmatpush1.msra.mxu0 0.0
    %845 = vmatprep.subr.mxu0 0.0
    %846 = vmatpush1.msra.mxu0 0.0
    %847 = vmatprep.subr.mxu0 0.0
    %848 = vmatpush1.msra.mxu0 0.0
    %849 = vmatprep.subr.mxu0 0.0
    %850 = vmatpush1.msra.mxu0 0.0
    %851 = vmatprep.subr.mxu0 0.0
    %852 = vmatpush1.msra.mxu0 0.0
    %853 = vmatprep.subr.mxu0 0.0
    %854 = vmatpush1.msra.mxu0 0.0
    %855 = vmatprep.subr.mxu0 0.0
    %856 = vmatpush1.msra.mxu0 0.0
    %857 = vmatprep.subr.mxu0 0.0
    %858 = vmatpush1.msra.mxu0 0.0
    %859 = vmatprep.subr.mxu0 0.0
    %860 = vmatpush1.msra.mxu0 0.0
    %861 = vmatprep.subr.mxu0 0.0
    %862 = vmatpush1.msra.mxu0 0.0
    %863 = vmatprep.subr.mxu0 0.0
    %864 = vmatpush1.msra.mxu0 0.0
    %865 = vmatprep.subr.mxu0 0.0
    %866 = vmatpush1.msra.mxu0 0.0
    %867 = vmatprep.subr.mxu0 0.0
    %868 = vmatpush1.msra.mxu0 0.0
    %869 = vmatprep.subr.mxu0 0.0
    %870 = vmatpush1.msra.mxu0 0.0
    %871 = vmatprep.subr.mxu0 0.0
    %872 = vmatpush1.msra.mxu0 0.0
    %873 = vmatprep.subr.mxu0 0.0
    %874 = vmatpush1.msra.mxu0 0.0
    %875 = vmatprep.subr.mxu0 0.0
    %876 = vmatpush1.msra.mxu0 0.0
    %877 = vmatprep.subr.mxu0 0.0
    %878 = vmatpush1.msra.mxu0 0.0
    %879 = vmatprep.subr.mxu0 0.0
    %880 = vmatpush1.msra.mxu0 0.0
    %881 = vmatprep.subr.mxu0 0.0
    %882 = vmatpush1.msra.mxu0 0.0
    %883 = vmatprep.subr.mxu0 0.0
    %884 = vmatpush1.msra.mxu0 0.0
    %885 = vmatprep.subr.mxu0 0.0
    %886 = vmatpush1.msra.mxu0 0.0
    %887 = vmatprep.subr.mxu0 0.0
    %888 = vmatpush1.msra.mxu0 0.0
    %889 = vmatprep.subr.mxu0 0.0
    %890 = vmatpush1.msra.mxu0 0.0
    %891 = vmatprep.subr.mxu0 0.0
    %892 = vmatpush1.msra.mxu0 0.0
    %893 = vmatprep.subr.mxu0 0.0
    %894 = vmatpush1.msra.mxu0 0.0
    %895 = vmatprep.mubr.f32.mxu0 0.0
    %896 = vmatmul.mubr.f32.gmra.mrb[0].mxu0 %v784
    %v897 = vpop.f32.mrb[0].mxu0
    %v898 = vadd.f32 0.0, %v897
    %v899 = vpop.f32.mrb[0].mxu0
    %900 = vmatprep.mubr.f32.mxu0 0.0
    %901 = vmatmul.mubr.f32.gmra.mrb[0].mxu0 %v787
    %v902 = vpop.f32.mrb[0].mxu0
    %v903 = vadd.f32 0.0, %v902
    %v904 = vpop.f32.mrb[0].mxu0
    %905 = vmatprep.mubr.f32.mxu0 0.0
    %906 = vmatmul.mubr.f32.gmra.mrb[0].mxu0 %v790
    %v907 = vpop.f32.mrb[0].mxu0
    %v908 = vadd.f32 0.0, %v907
    %v909 = vpop.f32.mrb[0].mxu0
    %910 = vmatprep.mubr.f32.mxu0 0.0
    %911 = vmatmul.mubr.f32.gmra.mrb[0].mxu0 %v793
    %v912 = vpop.f32.mrb[0].mxu0
    %v913 = vadd.f32 0.0, %v912
    %v914 = vpop.f32.mrb[0].mxu0
    %915 = vmatprep.mubr.f32.mxu0 0.0
    %916 = vmatmul.mubr.f32.gmra.mrb[0].mxu0 %v796
    %v917 = vpop.f32.mrb[0].mxu0
    %v918 = vadd.f32 0.0, %v917
    %v919 = vpop.f32.mrb[0].mxu0
    %920 = vmatprep.mubr.f32.mxu0 0.0
    %921 = vmatmul.mubr.f32.gmra.mrb[0].mxu0 %v799
    %v922 = vpop.f32.mrb[0].mxu0
    %v923 = vadd.f32 0.0, %v922
    %v924 = vpop.f32.mrb[0].mxu0
    %925 = vmatprep.mubr.f32.mxu0 0.0
    %926 = vmatmul.mubr.f32.gmra.mrb[0].mxu0 %v802
    %v927 = vpop.f32.mrb[0].mxu0
    %v928 = vadd.f32 0.0, %v927
    %v929 = vpop.f32.mrb[0].mxu0
    %930 = vmatprep.mubr.f32.mxu0 0.0
    %931 = vmatmul.mubr.f32.gmra.mrb[0].mxu0 %v805
    %v932 = vpop.f32.mrb[0].mxu0
    %v933 = vadd.f32 0.0, %v932
    %v934 = vpop.f32.mrb[0].mxu0
    %935 = vmatprep.mubr.f32.mxu0 0.0
    %936 = vmatmul.mubr.f32.gmra.mrb[0].mxu0 %v808
    %v937 = vpop.f32.mrb[0].mxu0
    %v938 = vadd.f32 0.0, %v937
    %v939 = vpop.f32.mrb[0].mxu0
    %940 = vmatprep.mubr.f32.mxu0 0.0
    %941 = vmatmul.mubr.f32.gmra.mrb[0].mxu0 %v811
    %v942 = vpop.f32.mrb[0].mxu0
    %v943 = vadd.f32 0.0, %v942
    %v944 = vpop.f32.mrb[0].mxu0
    %945 = vmatprep.mubr.f32.mxu0 0.0
    %946 = vmatmul.mubr.f32.gmra.mrb[0].mxu0 %v814
    %v947 = vpop.f32.mrb[0].mxu0
    %v948 = vadd.f32 0.0, %v947
    %v949 = vpop.f32.mrb[0].mxu0
    %950 = vmatprep.mubr.f32.mxu0 0.0
    %951 = vmatmul.mubr.f32.gmra.mrb[0].mxu0 %v817
    %v952 = vpop.f32.mrb[0].mxu0
    %v953 = vadd.f32 0.0, %v952
    %v954 = vpop.f32.mrb[0].mxu0
    %955 = vmatprep.mubr.f32.mxu0 0.0
    %956 = vmatmul.mubr.f32.gmra.mrb[0].mxu0 %v820
    %v957 = vpop.f32.mrb[0].mxu0
    %v958 = vadd.f32 0.0, %v957
    %v959 = vpop.f32.mrb[0].mxu0
    %960 = vmatprep.mubr.f32.mxu0 0.0
    %961 = vmatmul.mubr.f32.gmra.mrb[0].mxu0 %v823
    %v962 = vpop.f32.mrb[0].mxu0
    %v963 = vadd.f32 0.0, %v962
    %v964 = vpop.f32.mrb[0].mxu0
    %965 = vmatprep.mubr.f32.mxu0 0.0
    %966 = vmatmul.mubr.f32.gmra.mrb[0].mxu0 %v826
    %v967 = vpop.f32.mrb[0].mxu0
    %v968 = vadd.f32 0.0, %v967
    %v969 = vpop.f32.mrb[0].mxu0
    %970 = vmatprep.mubr.f32.mxu0 0.0
    %971 = vmatmul.mubr.f32.gmra.mrb[0].mxu0 %v829
    %v972 = vpop.f32.mrb[0].mxu0
    %v973 = vadd.f32 0.0, %v972
    %v974 = vpop.f32.mrb[0].mxu0
    %975 = vdwg.mxu0
    %v977 = vsel %vm715, %v741, 0
    %v980 = vsel %vm715, %v742, 0
    %v983 = vsel %vm715, %v743, 0
    %v986 = vsel %vm715, %v744, 0
    %v989 = vsel %vm715, %v745, 0
    %v992 = vsel %vm715, %v746, 0
    %v995 = vsel %vm715, %v747, 0
    %v998 = vsel %vm715, %v748, 0
    %v1001 = vsel %vm715, %v749, 0
    %v1004 = vsel %vm715, %v750, 0
    %v1007 = vsel %vm715, %v751, 0
    %v1010 = vsel %vm715, %v752, 0
    %v1013 = vsel %vm715, %v753, 0
    %v1016 = vsel %vm715, %v754, 0
    %v1019 = vsel %vm715, %v755, 0
    %v1022 = vsel %vm715, %v756, 0
    %1024 = vmatprep.subr.mxu0 0.0
    %1025 = vmatpush1.msra.mxu0 %v757
    %1026 = vmatprep.subr.mxu0 0.0
    %1027 = vmatpush1.msra.mxu0 %v758
    %1028 = vmatprep.subr.mxu0 0.0
    %1029 = vmatpush1.msra.mxu0 %v759
    %1030 = vmatprep.subr.mxu0 0.0
    %1031 = vmatpush1.msra.mxu0 %v760
    %1032 = vmatprep.subr.mxu0 0.0
    %1033 = vmatpush1.msra.mxu0 0.0
    %1034 = vmatprep.subr.mxu0 0.0
    %1035 = vmatpush1.msra.mxu0 0.0
    %1036 = vmatprep.subr.mxu0 0.0
    %1037 = vmatpush1.msra.mxu0 0.0
    %1038 = vmatprep.subr.mxu0 0.0
    %1039 = vmatpush1.msra.mxu0 0.0
    %1040 = vmatprep.subr.mxu0 0.0
    %1041 = vmatpush1.msra.mxu0 0.0
    %1042 = vmatprep.subr.mxu0 0.0
    %1043 = vmatpush1.msra.mxu0 0.0
    %1044 = vmatprep.subr.mxu0 0.0
    %1045 = vmatpush1.msra.mxu0 0.0
    %1046 = vmatprep.subr.mxu0 0.0
    %1047 = vmatpush1.msra.mxu0 0.0
    %1048 = vmatprep.subr.mxu0 0.0
    %1049 = vmatpush1.msra.mxu0 0.0
    %1050 = vmatprep.subr.mxu0 0.0
    %1051 = vmatpush1.msra.mxu0 0.0
    %1052 = vmatprep.subr.mxu0 0.0
    %1053 = vmatpush1.msra.mxu0 0.0
    %1054 = vmatprep.subr.mxu0 0.0
    %1055 = vmatpush1.msra.mxu0 0.0
    %1056 = vmatprep.subr.mxu0 0.0
    %1057 = vmatpush1.msra.mxu0 0.0
    %1058 = vmatprep.subr.mxu0 0.0
    %1059 = vmatpush1.msra.mxu0 0.0
    %1060 = vmatprep.subr.mxu0 0.0
    %1061 = vmatpush1.msra.mxu0 0.0
    %1062 = vmatprep.subr.mxu0 0.0
    %1063 = vmatpush1.msra.mxu0 0.0
    %1064 = vmatprep.subr.mxu0 0.0
    %1065 = vmatpush1.msra.mxu0 0.0
    %1066 = vmatprep.subr.mxu0 0.0
    %1067 = vmatpush1.msra.mxu0 0.0
    %1068 = vmatprep.subr.mxu0 0.0
    %1069 = vmatpush1.msra.mxu0 0.0
    %1070 = vmatprep.subr.mxu0 0.0
    %1071 = vmatpush1.msra.mxu0 0.0
    %1072 = vmatprep.subr.mxu0 0.0
    %1073 = vmatpush1.msra.mxu0 0.0
    %1074 = vmatprep.subr.mxu0 0.0
    %1075 = vmatpush1.msra.mxu0 0.0
    %1076 = vmatprep.subr.mxu0 0.0
    %1077 = vmatpush1.msra.mxu0 0.0
    %1078 = vmatprep.subr.mxu0 0.0
    %1079 = vmatpush1.msra.mxu0 0.0
    %1080 = vmatprep.subr.mxu0 0.0
    %1081 = vmatpush1.msra.mxu0 0.0
    %1082 = vmatprep.subr.mxu0 0.0
    %1083 = vmatpush1.msra.mxu0 0.0
    %1084 = vmatprep.subr.mxu0 0.0
    %1085 = vmatpush1.msra.mxu0 0.0
    %1086 = vmatprep.subr.mxu0 0.0
    %1087 = vmatpush1.msra.mxu0 0.0
    %1088 = vmatprep.mubr.f32.mxu0 0.0
    %1089 = vmatmul.mubr.f32.gmra.mrb[0].mxu0 %v977
    %v1090 = vpop.f32.mrb[0].mxu0
    %v1091 = vadd.f32 %v898, %v1090
    %v1092 = vpop.f32.mrb[0].mxu0
    %1093 = vmatprep.mubr.f32.mxu0 0.0
    %1094 = vmatmul.mubr.f32.gmra.mrb[0].mxu0 %v980
    %v1095 = vpop.f32.mrb[0].mxu0
    %v1096 = vadd.f32 %v903, %v1095
    %v1097 = vpop.f32.mrb[0].mxu0
    %1098 = vmatprep.mubr.f32.mxu0 0.0
    %1099 = vmatmul.mubr.f32.gmra.mrb[0].mxu0 %v983
    %v1100 = vpop.f32.mrb[0].mxu0
    %v1101 = vadd.f32 %v908, %v1100
    %v1102 = vpop.f32.mrb[0].mxu0
    %1103 = vmatprep.mubr.f32.mxu0 0.0
    %1104 = vmatmul.mubr.f32.gmra.mrb[0].mxu0 %v986
    %v1105 = vpop.f32.mrb[0].mxu0
    %v1106 = vadd.f32 %v913, %v1105
    %v1107 = vpop.f32.mrb[0].mxu0
    %1108 = vmatprep.mubr.f32.mxu0 0.0
    %1109 = vmatmul.mubr.f32.gmra.mrb[0].mxu0 %v989
    %v1110 = vpop.f32.mrb[0].mxu0
    %v1111 = vadd.f32 %v918, %v1110
    %v1112 = vpop.f32.mrb[0].mxu0
    %1113 = vmatprep.mubr.f32.mxu0 0.0
    %1114 = vmatmul.mubr.f32.gmra.mrb[0].mxu0 %v992
    %v1115 = vpop.f32.mrb[0].mxu0
    %v1116 = vadd.f32 %v923, %v1115
    %v1117 = vpop.f32.mrb[0].mxu0
    %1118 = vmatprep.mubr.f32.mxu0 0.0
    %1119 = vmatmul.mubr.f32.gmra.mrb[0].mxu0 %v995
    %v1120 = vpop.f32.mrb[0].mxu0
    %v1121 = vadd.f32 %v928, %v1120
    %v1122 = vpop.f32.mrb[0].mxu0
    %1123 = vmatprep.mubr.f32.mxu0 0.0
    %1124 = vmatmul.mubr.f32.gmra.mrb[0].mxu0 %v998
    %v1125 = vpop.f32.mrb[0].mxu0
    %v1126 = vadd.f32 %v933, %v1125
    %v1127 = vpop.f32.mrb[0].mxu0
    %1128 = vmatprep.mubr.f32.mxu0 0.0
    %1129 = vmatmul.mubr.f32.gmra.mrb[0].mxu0 %v1001
    %v1130 = vpop.f32.mrb[0].mxu0
    %v1131 = vadd.f32 %v938, %v1130
    %v1132 = vpop.f32.mrb[0].mxu0
    %1133 = vmatprep.mubr.f32.mxu0 0.0
    %1134 = vmatmul.mubr.f32.gmra.mrb[0].mxu0 %v1004
    %v1135 = vpop.f32.mrb[0].mxu0
    %v1136 = vadd.f32 %v943, %v1135
    %v1137 = vpop.f32.mrb[0].mxu0
    %1138 = vmatprep.mubr.f32.mxu0 0.0
    %1139 = vmatmul.mubr.f32.gmra.mrb[0].mxu0 %v1007
    %v1140 = vpop.f32.mrb[0].mxu0
    %v1141 = vadd.f32 %v948, %v1140
    %v1142 = vpop.f32.mrb[0].mxu0
    %1143 = vmatprep.mubr.f32.mxu0 0.0
    %1144 = vmatmul.mubr.f32.gmra.mrb[0].mxu0 %v1010
    %v1145 = vpop.f32.mrb[0].mxu0
    %v1146 = vadd.f32 %v953, %v1145
    %v1147 = vpop.f32.mrb[0].mxu0
    %1148 = vmatprep.mubr.f32.mxu0 0.0
    %1149 = vmatmul.mubr.f32.gmra.mrb[0].mxu0 %v1013
    %v1150 = vpop.f32.mrb[0].mxu0
    %v1151 = vadd.f32 %v958, %v1150
    %v1152 = vpop.f32.mrb[0].mxu0
    %1153 = vmatprep.mubr.f32.mxu0 0.0
    %1154 = vmatmul.mubr.f32.gmra.mrb[0].mxu0 %v1016
    %v1155 = vpop.f32.mrb[0].mxu0
    %v1156 = vadd.f32 %v963, %v1155
    %v1157 = vpop.f32.mrb[0].mxu0
    %1158 = vmatprep.mubr.f32.mxu0 0.0
    %1159 = vmatmul.mubr.f32.gmra.mrb[0].mxu0 %v1019
    %v1160 = vpop.f32.mrb[0].mxu0
    %v1161 = vadd.f32 %v968, %v1160
    %v1162 = vpop.f32.mrb[0].mxu0
    %1163 = vmatprep.mubr.f32.mxu0 0.0
    %1164 = vmatmul.mubr.f32.gmra.mrb[0].mxu0 %v1022
    %v1165 = vpop.f32.mrb[0].mxu0
    %v1166 = vadd.f32 %v973, %v1165
    %v1167 = vpop.f32.mrb[0].mxu0
    %1168 = vdwg.mxu0
    %v1169 = vld [vmem:[%s724] sm:$0xff]
    %v1170 = vld [vmem:[%s724 + $0x8] sm:$0xff]
    %v1171 = vld [vmem:[%s724 + $0x10] sm:$0xff]
    %v1172 = vld [vmem:[%s724 + $0x18] sm:$0xff]
    %v1173 = vld [vmem:[%s724 + $0x20] sm:$0xff]
    %v1174 = vld [vmem:[%s724 + $0x28] sm:$0xff]
    %v1175 = vld [vmem:[%s724 + $0x30] sm:$0xff]
    %v1176 = vld [vmem:[%s724 + $0x38] sm:$0xff]
    %v1177 = vld [vmem:[%s724 + $0x60] sm:$0xff]
    %v1178 = vld [vmem:[%s724 + $0x68] sm:$0xff]
    %v1179 = vld [vmem:[%s724 + $0x70] sm:$0xff]
    %v1180 = vld [vmem:[%s724 + $0x78] sm:$0xff]
    %v1181 = vld [vmem:[%s724 + $0x80] sm:$0xff]
    %v1182 = vld [vmem:[%s724 + $0x88] sm:$0xff]
    %v1183 = vld [vmem:[%s724 + $0x90] sm:$0xff]
    %v1184 = vld [vmem:[%s724 + $0x98] sm:$0xff]
    %s1185 = scalar_lea.vmem %s2, 64
    %v1186 = vld [vmem:[%s1185] sm:$0xff]
    %v1187 = vld [vmem:[%s1185 + $0x8] sm:$0xff]
    %v1188 = vld [vmem:[%s1185 + $0x10] sm:$0xff]
    %v1189 = vld [vmem:[%s1185 + $0x18] sm:$0xff]
    %v1191 = vsel %vm715, %v1169, 0
    %v1194 = vsel %vm715, %v1170, 0
    %v1197 = vsel %vm715, %v1171, 0
    %v1200 = vsel %vm715, %v1172, 0
    %v1203 = vsel %vm715, %v1173, 0
    %v1206 = vsel %vm715, %v1174, 0
    %v1209 = vsel %vm715, %v1175, 0
    %v1212 = vsel %vm715, %v1176, 0
    %v1215 = vsel %vm715, %v1177, 0
    %v1218 = vsel %vm715, %v1178, 0
    %v1221 = vsel %vm715, %v1179, 0
    %v1224 = vsel %vm715, %v1180, 0
    %v1227 = vsel %vm715, %v1181, 0
    %v1230 = vsel %vm715, %v1182, 0
    %v1233 = vsel %vm715, %v1183, 0
    %v1236 = vsel %vm715, %v1184, 0
    %1238 = vmatprep.subr.mxu0 0.0
    %1239 = vmatpush1.msra.mxu0 %v1186
    %1240 = vmatprep.subr.mxu0 0.0
    %1241 = vmatpush1.msra.mxu0 %v1187
    %1242 = vmatprep.subr.mxu0 0.0
    %1243 = vmatpush1.msra.mxu0 %v1188
    %1244 = vmatprep.subr.mxu0 0.0
    %1245 = vmatpush1.msra.mxu0 %v1189
    %1246 = vmatprep.subr.mxu0 0.0
    %1247 = vmatpush1.msra.mxu0 0.0
    %1248 = vmatprep.subr.mxu0 0.0
    %1249 = vmatpush1.msra.mxu0 0.0
    %1250 = vmatprep.subr.mxu0 0.0
    %1251 = vmatpush1.msra.mxu0 0.0
    %1252 = vmatprep.subr.mxu0 0.0
    %1253 = vmatpush1.msra.mxu0 0.0
    %1254 = vmatprep.subr.mxu0 0.0
    %1255 = vmatpush1.msra.mxu0 0.0
    %1256 = vmatprep.subr.mxu0 0.0
    %1257 = vmatpush1.msra.mxu0 0.0
    %1258 = vmatprep.subr.mxu0 0.0
    %1259 = vmatpush1.msra.mxu0 0.0
    %1260 = vmatprep.subr.mxu0 0.0
    %1261 = vmatpush1.msra.mxu0 0.0
    %1262 = vmatprep.subr.mxu0 0.0
    %1263 = vmatpush1.msra.mxu0 0.0
    %1264 = vmatprep.subr.mxu0 0.0
    %1265 = vmatpush1.msra.mxu0 0.0
    %1266 = vmatprep.subr.mxu0 0.0
    %1267 = vmatpush1.msra.mxu0 0.0
    %1268 = vmatprep.subr.mxu0 0.0
    %1269 = vmatpush1.msra.mxu0 0.0
    %1270 = vmatprep.subr.mxu0 0.0
    %1271 = vmatpush1.msra.mxu0 0.0
    %1272 = vmatprep.subr.mxu0 0.0
    %1273 = vmatpush1.msra.mxu0 0.0
    %1274 = vmatprep.subr.mxu0 0.0
    %1275 = vmatpush1.msra.mxu0 0.0
    %1276 = vmatprep.subr.mxu0 0.0
    %1277 = vmatpush1.msra.mxu0 0.0
    %1278 = vmatprep.subr.mxu0 0.0
    %1279 = vmatpush1.msra.mxu0 0.0
    %1280 = vmatprep.subr.mxu0 0.0
    %1281 = vmatpush1.msra.mxu0 0.0
    %1282 = vmatprep.subr.mxu0 0.0
    %1283 = vmatpush1.msra.mxu0 0.0
    %1284 = vmatprep.subr.mxu0 0.0
    %1285 = vmatpush1.msra.mxu0 0.0
    %1286 = vmatprep.subr.mxu0 0.0
    %1287 = vmatpush1.msra.mxu0 0.0
    %1288 = vmatprep.subr.mxu0 0.0
    %1289 = vmatpush1.msra.mxu0 0.0
    %1290 = vmatprep.subr.mxu0 0.0
    %1291 = vmatpush1.msra.mxu0 0.0
    %1292 = vmatprep.subr.mxu0 0.0
    %1293 = vmatpush1.msra.mxu0 0.0
    %1294 = vmatprep.subr.mxu0 0.0
    %1295 = vmatpush1.msra.mxu0 0.0
    %1296 = vmatprep.subr.mxu0 0.0
    %1297 = vmatpush1.msra.mxu0 0.0
    %1298 = vmatprep.subr.mxu0 0.0
    %1299 = vmatpush1.msra.mxu0 0.0
    %1300 = vmatprep.subr.mxu0 0.0
    %1301 = vmatpush1.msra.mxu0 0.0
    %1302 = vmatprep.mubr.f32.mxu0 0.0
    %1303 = vmatmul.mubr.f32.gmra.mrb[0].mxu0 %v1191
    %v1304 = vpop.f32.mrb[0].mxu0
    %v1305 = vadd.f32 0.0, %v1304
    %v1306 = vpop.f32.mrb[0].mxu0
    %1307 = vmatprep.mubr.f32.mxu0 0.0
    %1308 = vmatmul.mubr.f32.gmra.mrb[0].mxu0 %v1194
    %v1309 = vpop.f32.mrb[0].mxu0
    %v1310 = vadd.f32 0.0, %v1309
    %v1311 = vpop.f32.mrb[0].mxu0
    %1312 = vmatprep.mubr.f32.mxu0 0.0
    %1313 = vmatmul.mubr.f32.gmra.mrb[0].mxu0 %v1197
    %v1314 = vpop.f32.mrb[0].mxu0
    %v1315 = vadd.f32 0.0, %v1314
    %v1316 = vpop.f32.mrb[0].mxu0
    %1317 = vmatprep.mubr.f32.mxu0 0.0
    %1318 = vmatmul.mubr.f32.gmra.mrb[0].mxu0 %v1200
    %v1319 = vpop.f32.mrb[0].mxu0
    %v1320 = vadd.f32 0.0, %v1319
    %v1321 = vpop.f32.mrb[0].mxu0
    %1322 = vmatprep.mubr.f32.mxu0 0.0
    %1323 = vmatmul.mubr.f32.gmra.mrb[0].mxu0 %v1203
    %v1324 = vpop.f32.mrb[0].mxu0
    %v1325 = vadd.f32 0.0, %v1324
    %v1326 = vpop.f32.mrb[0].mxu0
    %1327 = vmatprep.mubr.f32.mxu0 0.0
    %1328 = vmatmul.mubr.f32.gmra.mrb[0].mxu0 %v1206
    %v1329 = vpop.f32.mrb[0].mxu0
    %v1330 = vadd.f32 0.0, %v1329
    %v1331 = vpop.f32.mrb[0].mxu0
    %1332 = vmatprep.mubr.f32.mxu0 0.0
    %1333 = vmatmul.mubr.f32.gmra.mrb[0].mxu0 %v1209
    %v1334 = vpop.f32.mrb[0].mxu0
    %v1335 = vadd.f32 0.0, %v1334
    %v1336 = vpop.f32.mrb[0].mxu0
    %1337 = vmatprep.mubr.f32.mxu0 0.0
    %1338 = vmatmul.mubr.f32.gmra.mrb[0].mxu0 %v1212
    %v1339 = vpop.f32.mrb[0].mxu0
    %v1340 = vadd.f32 0.0, %v1339
    %v1341 = vpop.f32.mrb[0].mxu0
    %1342 = vmatprep.mubr.f32.mxu0 0.0
    %1343 = vmatmul.mubr.f32.gmra.mrb[0].mxu0 %v1215
    %v1344 = vpop.f32.mrb[0].mxu0
    %v1345 = vadd.f32 0.0, %v1344
    %v1346 = vpop.f32.mrb[0].mxu0
    %1347 = vmatprep.mubr.f32.mxu0 0.0
    %1348 = vmatmul.mubr.f32.gmra.mrb[0].mxu0 %v1218
    %v1349 = vpop.f32.mrb[0].mxu0
    %v1350 = vadd.f32 0.0, %v1349
    %v1351 = vpop.f32.mrb[0].mxu0
    %1352 = vmatprep.mubr.f32.mxu0 0.0
    %1353 = vmatmul.mubr.f32.gmra.mrb[0].mxu0 %v1221
    %v1354 = vpop.f32.mrb[0].mxu0
    %v1355 = vadd.f32 0.0, %v1354
    %v1356 = vpop.f32.mrb[0].mxu0
    %1357 = vmatprep.mubr.f32.mxu0 0.0
    %1358 = vmatmul.mubr.f32.gmra.mrb[0].mxu0 %v1224
    %v1359 = vpop.f32.mrb[0].mxu0
    %v1360 = vadd.f32 0.0, %v1359
    %v1361 = vpop.f32.mrb[0].mxu0
    %1362 = vmatprep.mubr.f32.mxu0 0.0
    %1363 = vmatmul.mubr.f32.gmra.mrb[0].mxu0 %v1227
    %v1364 = vpop.f32.mrb[0].mxu0
    %v1365 = vadd.f32 0.0, %v1364
    %v1366 = vpop.f32.mrb[0].mxu0
    %1367 = vmatprep.mubr.f32.mxu0 0.0
    %1368 = vmatmul.mubr.f32.gmra.mrb[0].mxu0 %v1230
    %v1369 = vpop.f32.mrb[0].mxu0
    %v1370 = vadd.f32 0.0, %v1369
    %v1371 = vpop.f32.mrb[0].mxu0
    %1372 = vmatprep.mubr.f32.mxu0 0.0
    %1373 = vmatmul.mubr.f32.gmra.mrb[0].mxu0 %v1233
    %v1374 = vpop.f32.mrb[0].mxu0
    %v1375 = vadd.f32 0.0, %v1374
    %v1376 = vpop.f32.mrb[0].mxu0
    %1377 = vmatprep.mubr.f32.mxu0 0.0
    %1378 = vmatmul.mubr.f32.gmra.mrb[0].mxu0 %v1236
    %v1379 = vpop.f32.mrb[0].mxu0
    %v1380 = vadd.f32 0.0, %v1379
    %v1381 = vpop.f32.mrb[0].mxu0
    %1382 = vdwg.mxu0
    %v1383 = vadd.f32 %v1091, %v1305
    %v1384 = vadd.f32 %v1096, %v1310
    %v1385 = vadd.f32 %v1101, %v1315
    %v1386 = vadd.f32 %v1106, %v1320
    %v1387 = vadd.f32 %v1111, %v1325
    %v1388 = vadd.f32 %v1116, %v1330
    %v1389 = vadd.f32 %v1121, %v1335
    %v1390 = vadd.f32 %v1126, %v1340
    %v1391 = vadd.f32 %v1131, %v1345
    %v1392 = vadd.f32 %v1136, %v1350
    %v1393 = vadd.f32 %v1141, %v1355
    %v1394 = vadd.f32 %v1146, %v1360
    %v1395 = vadd.f32 %v1151, %v1365
    %v1396 = vadd.f32 %v1156, %v1370
    %v1397 = vadd.f32 %v1161, %v1375
    %v1398 = vadd.f32 %v1166, %v1380
    %v1399 = vld [vmem:[%s3] sm:$0xff]
    %v1400 = vld [vmem:[%s3 + $0x8] sm:$0xff]
    %v1401 = vld [vmem:[%s4] sm:$0xff]
    %v1402 = vld [vmem:[%s4 + $0x8] sm:$0xff]
    %v1404 = vsel %vm37, %v1383, 0
    %v1407 = vsel %vm37, %v1384, 0
    %v1410 = vsel %vm37, %v1385, 0
    %v1413 = vsel %vm37, %v1386, 0
    %v1416 = vsel %vm37, %v1387, 0
    %v1419 = vsel %vm37, %v1388, 0
    %v1422 = vsel %vm37, %v1389, 0
    %v1425 = vsel %vm37, %v1390, 0
    %v1428 = vsel %vm37, %v1391, 0
    %v1431 = vsel %vm37, %v1392, 0
    %v1434 = vsel %vm37, %v1393, 0
    %v1437 = vsel %vm37, %v1394, 0
    %v1440 = vsel %vm37, %v1395, 0
    %v1443 = vsel %vm37, %v1396, 0
    %v1446 = vsel %vm37, %v1397, 0
    %v1449 = vsel %vm37, %v1398, 0
    %1451 = vmatprep.subr.mxu0 0.0
    %1452 = vmatpush1.msra.mxu0 %v1401
    %1453 = vmatprep.subr.mxu0 0.0
    %1454 = vmatpush1.msra.mxu0 %v1402
    %1455 = vmatprep.subr.mxu0 0.0
    %1456 = vmatpush1.msra.mxu0 0.0
    %1457 = vmatprep.subr.mxu0 0.0
    %1458 = vmatpush1.msra.mxu0 0.0
    %1459 = vmatprep.subr.mxu0 0.0
    %1460 = vmatpush1.msra.mxu0 0.0
    %1461 = vmatprep.subr.mxu0 0.0
    %1462 = vmatpush1.msra.mxu0 0.0
    %1463 = vmatprep.subr.mxu0 0.0
    %1464 = vmatpush1.msra.mxu0 0.0
    %1465 = vmatprep.subr.mxu0 0.0
    %1466 = vmatpush1.msra.mxu0 0.0
    %1467 = vmatprep.subr.mxu0 0.0
    %1468 = vmatpush1.msra.mxu0 0.0
    %1469 = vmatprep.subr.mxu0 0.0
    %1470 = vmatpush1.msra.mxu0 0.0
    %1471 = vmatprep.subr.mxu0 0.0
    %1472 = vmatpush1.msra.mxu0 0.0
    %1473 = vmatprep.subr.mxu0 0.0
    %1474 = vmatpush1.msra.mxu0 0.0
    %1475 = vmatprep.subr.mxu0 0.0
    %1476 = vmatpush1.msra.mxu0 0.0
    %1477 = vmatprep.subr.mxu0 0.0
    %1478 = vmatpush1.msra.mxu0 0.0
    %1479 = vmatprep.subr.mxu0 0.0
    %1480 = vmatpush1.msra.mxu0 0.0
    %1481 = vmatprep.subr.mxu0 0.0
    %1482 = vmatpush1.msra.mxu0 0.0
    %1483 = vmatprep.subr.mxu0 0.0
    %1484 = vmatpush1.msra.mxu0 0.0
    %1485 = vmatprep.subr.mxu0 0.0
    %1486 = vmatpush1.msra.mxu0 0.0
    %1487 = vmatprep.subr.mxu0 0.0
    %1488 = vmatpush1.msra.mxu0 0.0
    %1489 = vmatprep.subr.mxu0 0.0
    %1490 = vmatpush1.msra.mxu0 0.0
    %1491 = vmatprep.subr.mxu0 0.0
    %1492 = vmatpush1.msra.mxu0 0.0
    %1493 = vmatprep.subr.mxu0 0.0
    %1494 = vmatpush1.msra.mxu0 0.0
    %1495 = vmatprep.subr.mxu0 0.0
    %1496 = vmatpush1.msra.mxu0 0.0
    %1497 = vmatprep.subr.mxu0 0.0
    %1498 = vmatpush1.msra.mxu0 0.0
    %1499 = vmatprep.subr.mxu0 0.0
    %1500 = vmatpush1.msra.mxu0 0.0
    %1501 = vmatprep.subr.mxu0 0.0
    %1502 = vmatpush1.msra.mxu0 0.0
    %1503 = vmatprep.subr.mxu0 0.0
    %1504 = vmatpush1.msra.mxu0 0.0
    %1505 = vmatprep.subr.mxu0 0.0
    %1506 = vmatpush1.msra.mxu0 0.0
    %1507 = vmatprep.subr.mxu0 0.0
    %1508 = vmatpush1.msra.mxu0 0.0
    %1509 = vmatprep.subr.mxu0 0.0
    %1510 = vmatpush1.msra.mxu0 0.0
    %1511 = vmatprep.subr.mxu0 0.0
    %1512 = vmatpush1.msra.mxu0 0.0
    %1513 = vmatprep.subr.mxu0 0.0
    %1514 = vmatpush1.msra.mxu0 0.0
    %1515 = vmatprep.mubr.f32.mxu0 0.0
    %1516 = vmatmul.mubr.f32.gmra.mrb[0].mxu0 %v1404
    %v1517 = vpop.f32.mrb[0].mxu0
    %v1518 = vadd.f32 0.0, %v1517
    %v1519 = vpop.f32.mrb[0].mxu0
    %1520 = vmatprep.mubr.f32.mxu0 0.0
    %1521 = vmatmul.mubr.f32.gmra.mrb[0].mxu0 %v1407
    %v1522 = vpop.f32.mrb[0].mxu0
    %v1523 = vadd.f32 0.0, %v1522
    %v1524 = vpop.f32.mrb[0].mxu0
    %1525 = vmatprep.mubr.f32.mxu0 0.0
    %1526 = vmatmul.mubr.f32.gmra.mrb[0].mxu0 %v1410
    %v1527 = vpop.f32.mrb[0].mxu0
    %v1528 = vadd.f32 0.0, %v1527
    %v1529 = vpop.f32.mrb[0].mxu0
    %1530 = vmatprep.mubr.f32.mxu0 0.0
    %1531 = vmatmul.mubr.f32.gmra.mrb[0].mxu0 %v1413
    %v1532 = vpop.f32.mrb[0].mxu0
    %v1533 = vadd.f32 0.0, %v1532
    %v1534 = vpop.f32.mrb[0].mxu0
    %1535 = vmatprep.mubr.f32.mxu0 0.0
    %1536 = vmatmul.mubr.f32.gmra.mrb[0].mxu0 %v1416
    %v1537 = vpop.f32.mrb[0].mxu0
    %v1538 = vadd.f32 0.0, %v1537
    %v1539 = vpop.f32.mrb[0].mxu0
    %1540 = vmatprep.mubr.f32.mxu0 0.0
    %1541 = vmatmul.mubr.f32.gmra.mrb[0].mxu0 %v1419
    %v1542 = vpop.f32.mrb[0].mxu0
    %v1543 = vadd.f32 0.0, %v1542
    %v1544 = vpop.f32.mrb[0].mxu0
    %1545 = vmatprep.mubr.f32.mxu0 0.0
    %1546 = vmatmul.mubr.f32.gmra.mrb[0].mxu0 %v1422
    %v1547 = vpop.f32.mrb[0].mxu0
    %v1548 = vadd.f32 0.0, %v1547
    %v1549 = vpop.f32.mrb[0].mxu0
    %1550 = vmatprep.mubr.f32.mxu0 0.0
    %1551 = vmatmul.mubr.f32.gmra.mrb[0].mxu0 %v1425
    %v1552 = vpop.f32.mrb[0].mxu0
    %v1553 = vadd.f32 0.0, %v1552
    %v1554 = vpop.f32.mrb[0].mxu0
    %1555 = vmatprep.mubr.f32.mxu0 0.0
    %1556 = vmatmul.mubr.f32.gmra.mrb[0].mxu0 %v1428
    %v1557 = vpop.f32.mrb[0].mxu0
    %v1558 = vadd.f32 0.0, %v1557
    %v1559 = vpop.f32.mrb[0].mxu0
    %1560 = vmatprep.mubr.f32.mxu0 0.0
    %1561 = vmatmul.mubr.f32.gmra.mrb[0].mxu0 %v1431
    %v1562 = vpop.f32.mrb[0].mxu0
    %v1563 = vadd.f32 0.0, %v1562
    %v1564 = vpop.f32.mrb[0].mxu0
    %1565 = vmatprep.mubr.f32.mxu0 0.0
    %1566 = vmatmul.mubr.f32.gmra.mrb[0].mxu0 %v1434
    %v1567 = vpop.f32.mrb[0].mxu0
    %v1568 = vadd.f32 0.0, %v1567
    %v1569 = vpop.f32.mrb[0].mxu0
    %1570 = vmatprep.mubr.f32.mxu0 0.0
    %1571 = vmatmul.mubr.f32.gmra.mrb[0].mxu0 %v1437
    %v1572 = vpop.f32.mrb[0].mxu0
    %v1573 = vadd.f32 0.0, %v1572
    %v1574 = vpop.f32.mrb[0].mxu0
    %1575 = vmatprep.mubr.f32.mxu0 0.0
    %1576 = vmatmul.mubr.f32.gmra.mrb[0].mxu0 %v1440
    %v1577 = vpop.f32.mrb[0].mxu0
    %v1578 = vadd.f32 0.0, %v1577
    %v1579 = vpop.f32.mrb[0].mxu0
    %1580 = vmatprep.mubr.f32.mxu0 0.0
    %1581 = vmatmul.mubr.f32.gmra.mrb[0].mxu0 %v1443
    %v1582 = vpop.f32.mrb[0].mxu0
    %v1583 = vadd.f32 0.0, %v1582
    %v1584 = vpop.f32.mrb[0].mxu0
    %1585 = vmatprep.mubr.f32.mxu0 0.0
    %1586 = vmatmul.mubr.f32.gmra.mrb[0].mxu0 %v1446
    %v1587 = vpop.f32.mrb[0].mxu0
    %v1588 = vadd.f32 0.0, %v1587
    %v1589 = vpop.f32.mrb[0].mxu0
    %1590 = vmatprep.mubr.f32.mxu0 0.0
    %1591 = vmatmul.mubr.f32.gmra.mrb[0].mxu0 %v1449
    %v1592 = vpop.f32.mrb[0].mxu0
    %v1593 = vadd.f32 0.0, %v1592
    %v1594 = vpop.f32.mrb[0].mxu0
    %1595 = vdwg.mxu0
    %v1597 = vsel %vm37, %v21, 0
    %v1600 = vsel %vm37, %v22, 0
    %v1603 = vsel %vm37, %v23, 0
    %v1606 = vsel %vm37, %v24, 0
    %v1609 = vsel %vm37, %v25, 0
    %v1612 = vsel %vm37, %v26, 0
    %v1615 = vsel %vm37, %v27, 0
    %v1618 = vsel %vm37, %v28, 0
    %v1621 = vsel %vm37, %v29, 0
    %v1624 = vsel %vm37, %v30, 0
    %v1627 = vsel %vm37, %v31, 0
    %v1630 = vsel %vm37, %v32, 0
    %v1633 = vsel %vm37, %v33, 0
    %v1636 = vsel %vm37, %v34, 0
    %v1639 = vsel %vm37, %v35, 0
    %v1642 = vsel %vm37, %v36, 0
    %1644 = vmatprep.subr.mxu0 0.0
    %1645 = vmatpush1.msra.mxu0 %v1399
    %1646 = vmatprep.subr.mxu0 0.0
    %1647 = vmatpush1.msra.mxu0 %v1400
    %1648 = vmatprep.subr.mxu0 0.0
    %1649 = vmatpush1.msra.mxu0 0.0
    %1650 = vmatprep.subr.mxu0 0.0
    %1651 = vmatpush1.msra.mxu0 0.0
    %1652 = vmatprep.subr.mxu0 0.0
    %1653 = vmatpush1.msra.mxu0 0.0
    %1654 = vmatprep.subr.mxu0 0.0
    %1655 = vmatpush1.msra.mxu0 0.0
    %1656 = vmatprep.subr.mxu0 0.0
    %1657 = vmatpush1.msra.mxu0 0.0
    %1658 = vmatprep.subr.mxu0 0.0
    %1659 = vmatpush1.msra.mxu0 0.0
    %1660 = vmatprep.subr.mxu0 0.0
    %1661 = vmatpush1.msra.mxu0 0.0
    %1662 = vmatprep.subr.mxu0 0.0
    %1663 = vmatpush1.msra.mxu0 0.0
    %1664 = vmatprep.subr.mxu0 0.0
    %1665 = vmatpush1.msra.mxu0 0.0
    %1666 = vmatprep.subr.mxu0 0.0
    %1667 = vmatpush1.msra.mxu0 0.0
    %1668 = vmatprep.subr.mxu0 0.0
    %1669 = vmatpush1.msra.mxu0 0.0
    %1670 = vmatprep.subr.mxu0 0.0
    %1671 = vmatpush1.msra.mxu0 0.0
    %1672 = vmatprep.subr.mxu0 0.0
    %1673 = vmatpush1.msra.mxu0 0.0
    %1674 = vmatprep.subr.mxu0 0.0
    %1675 = vmatpush1.msra.mxu0 0.0
    %1676 = vmatprep.subr.mxu0 0.0
    %1677 = vmatpush1.msra.mxu0 0.0
    %1678 = vmatprep.subr.mxu0 0.0
    %1679 = vmatpush1.msra.mxu0 0.0
    %1680 = vmatprep.subr.mxu0 0.0
    %1681 = vmatpush1.msra.mxu0 0.0
    %1682 = vmatprep.subr.mxu0 0.0
    %1683 = vmatpush1.msra.mxu0 0.0
    %1684 = vmatprep.subr.mxu0 0.0
    %1685 = vmatpush1.msra.mxu0 0.0
    %1686 = vmatprep.subr.mxu0 0.0
    %1687 = vmatpush1.msra.mxu0 0.0
    %1688 = vmatprep.subr.mxu0 0.0
    %1689 = vmatpush1.msra.mxu0 0.0
    %1690 = vmatprep.subr.mxu0 0.0
    %1691 = vmatpush1.msra.mxu0 0.0
    %1692 = vmatprep.subr.mxu0 0.0
    %1693 = vmatpush1.msra.mxu0 0.0
    %1694 = vmatprep.subr.mxu0 0.0
    %1695 = vmatpush1.msra.mxu0 0.0
    %1696 = vmatprep.subr.mxu0 0.0
    %1697 = vmatpush1.msra.mxu0 0.0
    %1698 = vmatprep.subr.mxu0 0.0
    %1699 = vmatpush1.msra.mxu0 0.0
    %1700 = vmatprep.subr.mxu0 0.0
    %1701 = vmatpush1.msra.mxu0 0.0
    %1702 = vmatprep.subr.mxu0 0.0
    %1703 = vmatpush1.msra.mxu0 0.0
    %1704 = vmatprep.subr.mxu0 0.0
    %1705 = vmatpush1.msra.mxu0 0.0
    %1706 = vmatprep.subr.mxu0 0.0
    %1707 = vmatpush1.msra.mxu0 0.0
    %1708 = vmatprep.mubr.f32.mxu0 0.0
    %1709 = vmatmul.mubr.f32.gmra.mrb[0].mxu0 %v1597
    %v1710 = vpop.f32.mrb[0].mxu0
    %v1711 = vadd.f32 %v1518, %v1710
    %v1712 = vpop.f32.mrb[0].mxu0
    %1713 = vmatprep.mubr.f32.mxu0 0.0
    %1714 = vmatmul.mubr.f32.gmra.mrb[0].mxu0 %v1600
    %v1715 = vpop.f32.mrb[0].mxu0
    %v1716 = vadd.f32 %v1523, %v1715
    %v1717 = vpop.f32.mrb[0].mxu0
    %1718 = vmatprep.mubr.f32.mxu0 0.0
    %1719 = vmatmul.mubr.f32.gmra.mrb[0].mxu0 %v1603
    %v1720 = vpop.f32.mrb[0].mxu0
    %v1721 = vadd.f32 %v1528, %v1720
    %v1722 = vpop.f32.mrb[0].mxu0
    %1723 = vmatprep.mubr.f32.mxu0 0.0
    %1724 = vmatmul.mubr.f32.gmra.mrb[0].mxu0 %v1606
    %v1725 = vpop.f32.mrb[0].mxu0
    %v1726 = vadd.f32 %v1533, %v1725
    %v1727 = vpop.f32.mrb[0].mxu0
    %1728 = vmatprep.mubr.f32.mxu0 0.0
    %1729 = vmatmul.mubr.f32.gmra.mrb[0].mxu0 %v1609
    %v1730 = vpop.f32.mrb[0].mxu0
    %v1731 = vadd.f32 %v1538, %v1730
    %v1732 = vpop.f32.mrb[0].mxu0
    %1733 = vmatprep.mubr.f32.mxu0 0.0
    %1734 = vmatmul.mubr.f32.gmra.mrb[0].mxu0 %v1612
    %v1735 = vpop.f32.mrb[0].mxu0
    %v1736 = vadd.f32 %v1543, %v1735
    %v1737 = vpop.f32.mrb[0].mxu0
    %1738 = vmatprep.mubr.f32.mxu0 0.0
    %1739 = vmatmul.mubr.f32.gmra.mrb[0].mxu0 %v1615
    %v1740 = vpop.f32.mrb[0].mxu0
    %v1741 = vadd.f32 %v1548, %v1740
    %v1742 = vpop.f32.mrb[0].mxu0
    %1743 = vmatprep.mubr.f32.mxu0 0.0
    %1744 = vmatmul.mubr.f32.gmra.mrb[0].mxu0 %v1618
    %v1745 = vpop.f32.mrb[0].mxu0
    %v1746 = vadd.f32 %v1553, %v1745
    %v1747 = vpop.f32.mrb[0].mxu0
    %1748 = vmatprep.mubr.f32.mxu0 0.0
    %1749 = vmatmul.mubr.f32.gmra.mrb[0].mxu0 %v1621
    %v1750 = vpop.f32.mrb[0].mxu0
    %v1751 = vadd.f32 %v1558, %v1750
    %v1752 = vpop.f32.mrb[0].mxu0
    %1753 = vmatprep.mubr.f32.mxu0 0.0
    %1754 = vmatmul.mubr.f32.gmra.mrb[0].mxu0 %v1624
    %v1755 = vpop.f32.mrb[0].mxu0
    %v1756 = vadd.f32 %v1563, %v1755
    %v1757 = vpop.f32.mrb[0].mxu0
    %1758 = vmatprep.mubr.f32.mxu0 0.0
    %1759 = vmatmul.mubr.f32.gmra.mrb[0].mxu0 %v1627
    %v1760 = vpop.f32.mrb[0].mxu0
    %v1761 = vadd.f32 %v1568, %v1760
    %v1762 = vpop.f32.mrb[0].mxu0
    %1763 = vmatprep.mubr.f32.mxu0 0.0
    %1764 = vmatmul.mubr.f32.gmra.mrb[0].mxu0 %v1630
    %v1765 = vpop.f32.mrb[0].mxu0
    %v1766 = vadd.f32 %v1573, %v1765
    %v1767 = vpop.f32.mrb[0].mxu0
    %1768 = vmatprep.mubr.f32.mxu0 0.0
    %1769 = vmatmul.mubr.f32.gmra.mrb[0].mxu0 %v1633
    %v1770 = vpop.f32.mrb[0].mxu0
    %v1771 = vadd.f32 %v1578, %v1770
    %v1772 = vpop.f32.mrb[0].mxu0
    %1773 = vmatprep.mubr.f32.mxu0 0.0
    %1774 = vmatmul.mubr.f32.gmra.mrb[0].mxu0 %v1636
    %v1775 = vpop.f32.mrb[0].mxu0
    %v1776 = vadd.f32 %v1583, %v1775
    %v1777 = vpop.f32.mrb[0].mxu0
    %1778 = vmatprep.mubr.f32.mxu0 0.0
    %1779 = vmatmul.mubr.f32.gmra.mrb[0].mxu0 %v1639
    %v1780 = vpop.f32.mrb[0].mxu0
    %v1781 = vadd.f32 %v1588, %v1780
    %v1782 = vpop.f32.mrb[0].mxu0
    %1783 = vmatprep.mubr.f32.mxu0 0.0
    %1784 = vmatmul.mubr.f32.gmra.mrb[0].mxu0 %v1642
    %v1785 = vpop.f32.mrb[0].mxu0
    %v1786 = vadd.f32 %v1593, %v1785
    %v1787 = vpop.f32.mrb[0].mxu0
    %1788 = vdwg.mxu0
    %1789 = vst.msk [vmem:[#allocation4] sm:$0xff] %vm37, %v1711
    %1790 = vst.msk [vmem:[#allocation4 + $0x8] sm:$0xff] %vm37, %v1716
    %1791 = vst.msk [vmem:[#allocation4 + $0x10] sm:$0xff] %vm37, %v1721
    %1792 = vst.msk [vmem:[#allocation4 + $0x18] sm:$0xff] %vm37, %v1726
    %1793 = vst.msk [vmem:[#allocation4 + $0x20] sm:$0xff] %vm37, %v1731
    %1794 = vst.msk [vmem:[#allocation4 + $0x28] sm:$0xff] %vm37, %v1736
    %1795 = vst.msk [vmem:[#allocation4 + $0x30] sm:$0xff] %vm37, %v1741
    %1796 = vst.msk [vmem:[#allocation4 + $0x38] sm:$0xff] %vm37, %v1746
    %1797 = vst.msk [vmem:[#allocation4 + $0x40] sm:$0xff] %vm37, %v1751
    %1798 = vst.msk [vmem:[#allocation4 + $0x48] sm:$0xff] %vm37, %v1756
    %1799 = vst.msk [vmem:[#allocation4 + $0x50] sm:$0xff] %vm37, %v1761
    %1800 = vst.msk [vmem:[#allocation4 + $0x58] sm:$0xff] %vm37, %v1766
    %1801 = vst.msk [vmem:[#allocation4 + $0x60] sm:$0xff] %vm37, %v1771
    %1802 = vst.msk [vmem:[#allocation4 + $0x68] sm:$0xff] %vm37, %v1776
    %1803 = vst.msk [vmem:[#allocation4 + $0x70] sm:$0xff] %vm37, %v1781
    %1804 = vst.msk [vmem:[#allocation4 + $0x78] sm:$0xff] %vm37, %v1786
    // Predicated region
    $region22: #{dcnn_forward.1} parent=1 // pred_check
      _
    $region23: #{dcnn_forward.1} parent=1 // pred_check_branch
      %1806 = sbr.rel (0) target = $region25
    $region24: #{dcnn_forward.1} parent=1 // pred_region
      %s1808 = ssub.s32 2048, 2048
      %1809 = vsyncadd [#allocation5], %s1808
      %s1810 = sshll.u32 [#allocation4], 4
      %s1811 = int_to_ptr.vmem [resolvable:$true] %s1810
      %1816 = dma.vmem_to_hbm [thread:$0]  %s1811, 2048, %s5, [#allocation5], 128, 128, 8
    $region25: #{dcnn_forward.1} parent=1 // pred_fallthru
      _
    // Predicated region
    $region26: #{dcnn_forward.1} parent=1 // pred_check
      _
    $region27: #{dcnn_forward.1} parent=1 // pred_check_branch
      %1818 = sbr.rel (0) target = $region29
    $region28: #{dcnn_forward.1} parent=1 // pred_region
      %1819 = dma.done [#allocation5], 2048
    $region29: #{dcnn_forward.1} parent=1 // pred_fallthru
      _
    %1820 = vsyncpa [#allocation5], 1

</llo_original>
